<compile_context>
chip_gen: v7x
topology: tpu7x:2x2x1
jax: 0.10.0
libtpu: 0.0.40
codegen_flags: <defaults>
</compile_context>

<pallas_src>
import jax
import jax.numpy as jnp
from jax.experimental import pallas as pl
from jax.experimental.pallas import tpu as pltpu

HIDDEN = 768   # bert-base-uncased hidden_size
MID = 512      # first pooler layer
OUT = 256      # second pooler layer


def _round_up(x, m):
    return (x + m - 1) // m * m


def _mlp(x_bf16, w1, b1, w2, b2):
    # bf16 operands on the MXU, f32 accumulation; bias + ReLU in f32
    # (v5e VPU has no bf16), re-cast to bf16 only for the second matmul.
    h = jnp.dot(x_bf16, w1, preferred_element_type=jnp.float32)
    h = jnp.maximum(h + b1, 0.0).astype(jnp.bfloat16)
    y = jnp.dot(h, w2, preferred_element_type=jnp.float32)
    return jnp.maximum(y + b2, 0.0)


def _pooler_concat_kernel(xa_ref, xb_ref, w1_ref, b1_ref, w2_ref, b2_ref,
                          oa_ref, ob_ref):
    """Large-batch path: one fused MLP over both branch tiles per grid step."""
    tr = oa_ref.shape[0]
    # In-kernel dtype cast (VPU, hidden under DMA/MXU) + VMEM-side concat:
    # one [2*TR, HIDDEN] operand -> weights pushed into the MXU once.
    x = jnp.concatenate(
        [xa_ref[...].astype(jnp.bfloat16), xb_ref[...].astype(jnp.bfloat16)],
        axis=0)
    y = _mlp(x, w1_ref[...], b1_ref[...], w2_ref[...], b2_ref[...])
    oa_ref[...] = y[:tr].astype(oa_ref.dtype)
    ob_ref[...] = y[tr:].astype(ob_ref.dtype)


def _pooler_branch_kernel(x_ref, w1_ref, b1_ref, w2_ref, b2_ref, o_ref):
    """Tiny-batch path: one branch per grid step (branch axis is 'parallel')."""
    y = _mlp(x_ref[...].astype(jnp.bfloat16),
             w1_ref[...], b1_ref[...], w2_ref[...], b2_ref[...])
    o_ref[...] = y.astype(o_ref.dtype)


def pooler_mlp_pair(hidden_a, hidden_b, params, *, row_tile=512,
                    out_dtype=jnp.float32):
    """Run the fused NN pooler on both branches with one pallas_call.

    hidden_a / hidden_b: [B, HIDDEN] in any float dtype (f32 or bf16 -- no
    wrapper-side cast is performed; the kernel casts to bf16 internally).
    Returns (pooled_a, pooled_b), each [B, OUT] in `out_dtype`.
    """
    w1, b1, w2, b2 = params
    B = hidden_a.shape[0]

    # Row tiling: sublane-aligned (16 for bf16 packing), large enough to
    # amortize the per-grid-step overhead, sized to minimise padding waste.
    if B <= row_tile:
        num_tiles = 1
        TR = _round_up(B, 16)
    else:
        num_tiles = -(-B // row_tile)               # cdiv
        TR = _round_up(-(-B // num_tiles), 16)      # balanced tile, 16-aligned
    Bp = num_tiles * TR

    xa, xb = hidden_a, hidden_b                     # native dtype, no cast
    if Bp != B:                                     # pad only when ragged
        pad = ((0, Bp - B), (0, 0))
        xa = jnp.pad(xa, pad)
        xb = jnp.pad(xb, pad)

    # Weight/bias blocks pinned to (0, 0): VMEM-resident across the grid.
    pinned = lambda shape: pl.BlockSpec(shape, lambda i: (0, 0))
    weight_specs = [
        pinned((HIDDEN, MID)),   # w1
        pinned((1, MID)),        # b1
        pinned((MID, OUT)),      # w2
        pinned((1, OUT)),        # b2
    ]

    if num_tiles > 1:
        # ---- large-batch path: 1-D row grid, branches fused per step ----
        row_in = pl.BlockSpec((TR, HIDDEN), lambda i: (i, 0))
        row_out = pl.BlockSpec((TR, OUT), lambda i: (i, 0))
        pooled_a, pooled_b = pl.pallas_call(
            _pooler_concat_kernel,
            out_shape=(
                jax.ShapeDtypeStruct((Bp, OUT), out_dtype),
                jax.ShapeDtypeStruct((Bp, OUT), out_dtype),
            ),
            grid_spec=pltpu.PrefetchScalarGridSpec(
                num_scalar_prefetch=0,
                grid=(num_tiles,),
                in_specs=[row_in, row_in] + weight_specs,
                out_specs=(row_out, row_out),
            ),
            compiler_params=pltpu.CompilerParams(
                dimension_semantics=("parallel",),   # shard rows across TCs
            ),
        )(xa, xb, w1, b1, w2, b2)
        # Padded rows contain ReLU(bias-chain) garbage -> slice them off.
        return pooled_a[:B], pooled_b[:B]

    # ---- tiny-batch path: branch-parallel grid so both v7x TCs get work ----
    # Stacking two tiny [Bp, HIDDEN] arrays is a negligible copy at small B.
    x = jnp.stack([xa, xb])                          # [2, Bp, HIDDEN]
    pooled = pl.pallas_call(
        _pooler_branch_kernel,
        out_shape=jax.ShapeDtypeStruct((2, Bp, OUT), out_dtype),
        grid_spec=pltpu.PrefetchScalarGridSpec(
            num_scalar_prefetch=0,
            grid=(2,),
            in_specs=[pl.BlockSpec((None, Bp, HIDDEN), lambda i: (i, 0, 0))]
                     + weight_specs,
            out_specs=pl.BlockSpec((None, Bp, OUT), lambda i: (i, 0, 0)),
        ),
        compiler_params=pltpu.CompilerParams(
            dimension_semantics=("parallel",),       # one branch per TC
        ),
    )(x, w1, b1, w2, b2)
    return pooled[0, :B], pooled[1, :B]


@jax.jit
def model_forward(hidden_a, hidden_b, params):
    """Mirrors Model.forward for pooler_type == 'NN'.

    hidden_a / hidden_b: [B, HIDDEN] -- BERT last_hidden_state[:, -1, :] for
    each of the B index pairs. Returns (pooled_a, pooled_b) as [B, OUT]
    arrays (row i corresponds to the i-th embedding of the original
    list-of-embeddings return).
    """
    return pooler_mlp_pair(hidden_a, hidden_b, params)


def init_params(key):
    k1, k2, k3, k4 = jax.random.split(key, 4)
    # nn.Linear-like init; weights stored pre-transposed as [in, out] and in
    # bf16 (explicit accuracy decision: halves weight HBM traffic, native MXU
    # operand dtype).  Biases stay f32.
    w1 = (jax.random.normal(k1, (HIDDEN, MID), jnp.float32)
          * (1.0 / HIDDEN ** 0.5)).astype(jnp.bfloat16)
    b1 = jax.random.normal(k2, (1, MID), jnp.float32) * 0.01
    w2 = (jax.random.normal(k3, (MID, OUT), jnp.float32)
          * (1.0 / MID ** 0.5)).astype(jnp.bfloat16)
    b2 = jax.random.normal(k4, (1, OUT), jnp.float32) * 0.01
    return w1, b1, w2, b2


if __name__ == "__main__":
    key = jax.random.PRNGKey(0)
    kp, ka, kb = jax.random.split(key, 3)

    params = init_params(kp)

    # Plain-JAX reference with the identical bf16-operand / f32-accumulate
    # numerics scheme used by the kernel.
    def ref_mlp(x, p):
        w1, b1, w2, b2 = p
        xb16 = x.astype(jnp.bfloat16)
        h = jnp.dot(xb16, w1, preferred_element_type=jnp.float32) + b1
        h = jnp.maximum(h, 0.0).astype(jnp.bfloat16)
        y = jnp.dot(h, w2, preferred_element_type=jnp.float32) + b2
        return jnp.maximum(y, 0.0)

    # --- shipped use case: B = 2 index pairs (tiny-batch, branch-parallel) ---
    B = 2
    # Synthetic stand-ins for BERT last-token hidden states, one per encoding.
    hidden_a = jax.random.normal(ka, (B, HIDDEN), jnp.float32)
    hidden_b = jax.random.normal(kb, (B, HIDDEN), jnp.float32)

    pooled_a, pooled_b = model_forward(hidden_a, hidden_b, params)
    jax.block_until_ready((pooled_a, pooled_b))

    ref_a = ref_mlp(hidden_a, params)
    ref_b = ref_mlp(hidden_b, params)
    assert pooled_a.shape == (B, OUT) and pooled_b.shape == (B, OUT)
    assert jnp.allclose(pooled_a, ref_a, atol=1e-2, rtol=1e-2)
    assert jnp.allclose(pooled_b, ref_b, atol=1e-2, rtol=1e-2)

    # --- also exercise the multi-tile fused-branch path (ragged batch) ---
    B2 = 40
    ha2 = jax.random.normal(ka, (B2, HIDDEN), jnp.float32)
    hb2 = jax.random.normal(kb, (B2, HIDDEN), jnp.float32)
    pa2, pb2 = pooler_mlp_pair(ha2, hb2, params, row_tile=16)
    jax.block_until_ready((pa2, pb2))
    assert pa2.shape == (B2, OUT) and pb2.shape == (B2, OUT)
    assert jnp.allclose(pa2, ref_mlp(ha2, params), atol=1e-2, rtol=1e-2)
    assert jnp.allclose(pb2, ref_mlp(hb2, params), atol=1e-2, rtol=1e-2)

    print("KERNEL_OK")
</pallas_src>

<mosaic_0001>
module attributes {stable_mosaic.version = 11 : i64} {
  func.func @_pooler_branch_kernel(%arg0: i32, %arg1: memref<1x16x768xf32, #tpu.memory_space<vmem>>, %arg2: memref<768x512xbf16, #tpu.memory_space<vmem>>, %arg3: memref<1x512xf32, #tpu.memory_space<vmem>>, %arg4: memref<512x256xbf16, #tpu.memory_space<vmem>>, %arg5: memref<1x256xf32, #tpu.memory_space<vmem>>, %arg6: memref<1x16x256xf32, #tpu.memory_space<vmem>>) attributes {dimension_semantics = [#tpu.dimension_semantics<parallel>], iteration_bounds = array<i64: 2>, scalar_prefetch = 0 : i64, scratch_operands = 0 : i64, tpu.core_type = #tpu.core_type<tc>, window_params = [{transform_indices = @transform_0, window_bounds = array<i64: 1, 16, 768>}, {pipeline_mode = #tpu.pipeline_mode<synchronous>, transform_indices = @transform_1, window_bounds = array<i64: 768, 512>}, {pipeline_mode = #tpu.pipeline_mode<synchronous>, transform_indices = @transform_2, window_bounds = array<i64: 1, 512>}, {pipeline_mode = #tpu.pipeline_mode<synchronous>, transform_indices = @transform_3, window_bounds = array<i64: 512, 256>}, {pipeline_mode = #tpu.pipeline_mode<synchronous>, transform_indices = @transform_4, window_bounds = array<i64: 1, 256>}, {transform_indices = @transform_5, window_bounds = array<i64: 1, 16, 256>}]} {
    %c0 = arith.constant 0 : index
    %c0_0 = arith.constant 0 : index
    %c0_1 = arith.constant 0 : index
    %0 = vector.load %arg1[%c0, %c0_0, %c0_1] : memref<1x16x768xf32, #tpu.memory_space<vmem>>, vector<1x16x768xf32>
    %1 = vector.shape_cast %0 : vector<1x16x768xf32> to vector<16x768xf32>
    %2 = arith.truncf %1 : vector<16x768xf32> to vector<16x768xbf16>
    %c0_2 = arith.constant 0 : index
    %c0_3 = arith.constant 0 : index
    %3 = vector.load %arg2[%c0_2, %c0_3] : memref<768x512xbf16, #tpu.memory_space<vmem>>, vector<768x512xbf16>
    %c0_4 = arith.constant 0 : index
    %c0_5 = arith.constant 0 : index
    %4 = vector.load %arg3[%c0_4, %c0_5] : memref<1x512xf32, #tpu.memory_space<vmem>>, vector<1x512xf32>
    %c0_6 = arith.constant 0 : index
    %c0_7 = arith.constant 0 : index
    %5 = vector.load %arg4[%c0_6, %c0_7] : memref<512x256xbf16, #tpu.memory_space<vmem>>, vector<512x256xbf16>
    %c0_8 = arith.constant 0 : index
    %c0_9 = arith.constant 0 : index
    %6 = vector.load %arg5[%c0_8, %c0_9] : memref<1x256xf32, #tpu.memory_space<vmem>>, vector<1x256xf32>
    %cst = arith.constant dense<0.000000e+00> : vector<16x512xf32>
    %7 = tpu.matmul %2, %3, %cst {dimension_numbers = #tpu.dot_dimension_numbers<[1], [0], [0], [1], [0, 0, 1, 1], [], []>} : vector<16x768xbf16>, vector<768x512xbf16>, vector<16x512xf32> -> vector<16x512xf32>
    %8 = vector.broadcast %4 : vector<1x512xf32> to vector<16x512xf32>
    %9 = arith.addf %7, %8 : vector<16x512xf32>
    %cst_10 = arith.constant 0.000000e+00 : f32
    %10 = vector.broadcast %cst_10 : f32 to vector<16x512xf32>
    %11 = arith.maximumf %9, %10 : vector<16x512xf32>
    %12 = arith.truncf %11 : vector<16x512xf32> to vector<16x512xbf16>
    %cst_11 = arith.constant dense<0.000000e+00> : vector<16x256xf32>
    %13 = tpu.matmul %12, %5, %cst_11 {dimension_numbers = #tpu.dot_dimension_numbers<[1], [0], [0], [1], [0, 0, 1, 1], [], []>} : vector<16x512xbf16>, vector<512x256xbf16>, vector<16x256xf32> -> vector<16x256xf32>
    %14 = vector.broadcast %6 : vector<1x256xf32> to vector<16x256xf32>
    %15 = arith.addf %13, %14 : vector<16x256xf32>
    %cst_12 = arith.constant 0.000000e+00 : f32
    %16 = vector.broadcast %cst_12 : f32 to vector<16x256xf32>
    %17 = arith.maximumf %15, %16 : vector<16x256xf32>
    %c0_13 = arith.constant 0 : index
    %c0_14 = arith.constant 0 : index
    %c0_15 = arith.constant 0 : index
    %18 = vector.load %arg6[%c0_13, %c0_14, %c0_15] : memref<1x16x256xf32, #tpu.memory_space<vmem>>, vector<1x16x256xf32>
    %19 = vector.shape_cast %18 : vector<1x16x256xf32> to vector<16x256xf32>
    %20 = vector.shape_cast %17 : vector<16x256xf32> to vector<1x16x256xf32>
    tpu.vector_store %arg6[%c0_13, %c0_14, %c0_15], %20 {strides = array<i32>} : memref<1x16x256xf32, #tpu.memory_space<vmem>>, vector<1x16x256xf32>,
    return
  }
  func.func @transform_0(%arg0: i32) -> (i32, i32, i32) {
    %c0_i32 = arith.constant 0 : i32
    %c0_i32_0 = arith.constant 0 : i32
    %c0_i32_1 = arith.constant 0 : i32
    return %arg0, %c0_i32, %c0_i32_0 : i32, i32, i32
  }
  func.func @transform_1(%arg0: i32) -> (i32, i32) {
    %c0_i32 = arith.constant 0 : i32
    %c0_i32_0 = arith.constant 0 : i32
    %c0_i32_1 = arith.constant 0 : i32
    return %c0_i32, %c0_i32_0 : i32, i32
  }
  func.func @transform_2(%arg0: i32) -> (i32, i32) {
    %c0_i32 = arith.constant 0 : i32
    %c0_i32_0 = arith.constant 0 : i32
    %c0_i32_1 = arith.constant 0 : i32
    return %c0_i32, %c0_i32_0 : i32, i32
  }
  func.func @transform_3(%arg0: i32) -> (i32, i32) {
    %c0_i32 = arith.constant 0 : i32
    %c0_i32_0 = arith.constant 0 : i32
    %c0_i32_1 = arith.constant 0 : i32
    return %c0_i32, %c0_i32_0 : i32, i32
  }
  func.func @transform_4(%arg0: i32) -> (i32, i32) {
    %c0_i32 = arith.constant 0 : i32
    %c0_i32_0 = arith.constant 0 : i32
    %c0_i32_1 = arith.constant 0 : i32
    return %c0_i32, %c0_i32_0 : i32, i32
  }
  func.func @transform_5(%arg0: i32) -> (i32, i32, i32) {
    %c0_i32 = arith.constant 0 : i32
    %c0_i32_0 = arith.constant 0 : i32
    %c0_i32_1 = arith.constant 0 : i32
    return %arg0, %c0_i32, %c0_i32_0 : i32, i32, i32
  }
}

</mosaic_0001>

<llo_original>
// kernel: model_forward.1
$region0: #{model_forward.1}
  #allocation0 [shape = 'u32[]', space=smem, size = 0x4, offset = 0x4, fixed_abs, tag = 'smem constant byte address 0x4 - core index']
  #allocation1 [shape = 'u32[144,128]{1,0:T(1,128)}', space=vmem, size = 0x12000, scoped, tag = 'internal scratch']
  %s0 = inlined_call_operand.vmem [shape: f32[2,16,768], index: 0, kind: input, shape index: {}]
  %s1 = inlined_call_operand.hbm [shape: bf16[768,512], index: 1, kind: input, shape index: {}]
  %s2 = inlined_call_operand.vmem [shape: f32[1,512], index: 2, kind: input, shape index: {}]
  %s3 = inlined_call_operand.vmem [shape: bf16[512,256], index: 3, kind: input, shape index: {}]
  %s4 = inlined_call_operand.vmem [shape: f32[1,256], index: 4, kind: input, shape index: {}]
  %s5 = inlined_call_operand.vmem [shape: f32[2,16,256], index: 5, kind: output, shape index: {}]
  %s6 = sld [smem:[#allocation0]]
  $region57: #{model_forward.1} parent=0
    _
  %s8 = ssub.s32 1, %s6
  %s9 = scalar_select 0, %s8, %s6
  $region1: #{model_forward.1} parent=0
    #allocation2 [shape = 'u8[786432]{0}', space=vmem, size = 0xc0000, scoped, tag = 'input window, operand 1, single buffered']
    #allocation3 [shape = 's32[2]{0}', space=sflag, size = 0x8, scoped, tag = 'scoped memory for model_forward.1']
    %10 = vsyncpa [#allocation3], 0
    loop: start=0, step=1, limit=4
    $region2: #{model_forward.1} parent=1 // loop_pre_header
      _
    $region3: #{model_forward.1} parent=1 // loop_header
      %s12 = sphi 0, %s16
      %p13 = scmp.ge.s32.totalorder %s12, 4
      %s22 = sphi 0, %s24
      %s25 = sphi 0, %s22
      %s26 = sphi 0, %s25
      %s42 = sphi 0, %s26
      %s46 = sphi 0, %s46
      %s48 = sphi 0, %s46
      %s49 = sphi 0, %s48
      %s63 = sphi 0, %s49
      %s67 = sphi 0, %s67
      %s69 = sphi 0, %s67
      %s70 = sphi 0, %s69
      %s84 = sphi 0, %s70
      %s88 = sphi 0, %s88
      %s90 = sphi 0, %s88
      %s91 = sphi 0, %s90
      %s105 = sphi 0, %s91
      %s109 = sphi 0, %s109
      %s111 = sphi 0, %s109
      %s112 = sphi 0, %s111
      %s126 = sphi 0, %s112
      %s132 = sphi 0, %s134
      %s135 = sphi 0, %s132
      %s136 = sphi 0, %s135
      %s152 = sphi 0, %s136
    $region4: #{model_forward.1} parent=1 // loop_header_branch
      %15 = sbr.rel (%p13) target = $region8
    $region5: #{model_forward.1} parent=1 // loop_body
      %s17 = ssub.s32 %s12, 1
      %s18 = ssub.s32 %s12, 2
      %s19 = sadd.s32 %s12, 1
      %s20 = ssub.s32 %s12, %s19
      %p21 = scmp.eq.s32.totalorder %s20, 0
      %s23 = sadd.s32 %s22, 1
      %s24 = scalar_select %p21, %s22, %s23
      %p27 = pneg %p21
      %p28 = scmp.eq.s32.totalorder %s12, 1
      %p29 = por %p27, %p28
      %p30 = scmp.ne.s32.totalorder %s22, %s25
      %p31 = scmp.eq.s32.totalorder %s12, 0
      %p32 = por %p30, %p31
      %p33 = scmp.ne.s32.totalorder %s22, %s25
      %p34 = scmp.eq.s32.totalorder %s17, 1
      %p35 = por %p33, %p34
      %p36 = scmp.ne.s32.totalorder %s25, %s26
      %p37 = scmp.eq.s32.totalorder %s17, 0
      %p38 = por %p36, %p37
      %p39 = scmp.ne.s32.totalorder %s25, %s26
      %p40 = scmp.eq.s32.totalorder %s18, 1
      %p41 = por %p39, %p40
      %p43 = scmp.ne.s32.totalorder %s26, %s42
      %p44 = scmp.eq.s32.totalorder %s18, 0
      %p45 = por %p43, %p44
      %s47 = sadd.s32 %s46, 1
      %p50 = scmp.eq.s32.totalorder %s12, 1
      %p51 = scmp.ne.s32.totalorder %s46, %s48
      %p52 = scmp.eq.s32.totalorder %s12, 0
      %p53 = por %p51, %p52
      %p54 = scmp.ne.s32.totalorder %s46, %s48
      %p55 = scmp.eq.s32.totalorder %s17, 1
      %p56 = por %p54, %p55
      %p57 = scmp.ne.s32.totalorder %s48, %s49
      %p58 = scmp.eq.s32.totalorder %s17, 0
      %p59 = por %p57, %p58
      %p60 = scmp.ne.s32.totalorder %s48, %s49
      %p61 = scmp.eq.s32.totalorder %s18, 1
      %p62 = por %p60, %p61
      %p64 = scmp.ne.s32.totalorder %s49, %s63
      %p65 = scmp.eq.s32.totalorder %s18, 0
      %p66 = por %p64, %p65
      %s68 = sadd.s32 %s67, 1
      %p71 = scmp.eq.s32.totalorder %s12, 1
      %p72 = scmp.ne.s32.totalorder %s67, %s69
      %p73 = scmp.eq.s32.totalorder %s12, 0
      %p74 = por %p72, %p73
      %p75 = scmp.ne.s32.totalorder %s67, %s69
      %p76 = scmp.eq.s32.totalorder %s17, 1
      %p77 = por %p75, %p76
      %p78 = scmp.ne.s32.totalorder %s69, %s70
      %p79 = scmp.eq.s32.totalorder %s17, 0
      %p80 = por %p78, %p79
      %p81 = scmp.ne.s32.totalorder %s69, %s70
      %p82 = scmp.eq.s32.totalorder %s18, 1
      %p83 = por %p81, %p82
      %p85 = scmp.ne.s32.totalorder %s70, %s84
      %p86 = scmp.eq.s32.totalorder %s18, 0
      %p87 = por %p85, %p86
      %s89 = sadd.s32 %s88, 1
      %p92 = scmp.eq.s32.totalorder %s12, 1
      %p93 = scmp.ne.s32.totalorder %s88, %s90
      %p94 = scmp.eq.s32.totalorder %s12, 0
      %p95 = por %p93, %p94
      %p96 = scmp.ne.s32.totalorder %s88, %s90
      %p97 = scmp.eq.s32.totalorder %s17, 1
      %p98 = por %p96, %p97
      %p99 = scmp.ne.s32.totalorder %s90, %s91
      %p100 = scmp.eq.s32.totalorder %s17, 0
      %p101 = por %p99, %p100
      %p102 = scmp.ne.s32.totalorder %s90, %s91
      %p103 = scmp.eq.s32.totalorder %s18, 1
      %p104 = por %p102, %p103
      %p106 = scmp.ne.s32.totalorder %s91, %s105
      %p107 = scmp.eq.s32.totalorder %s18, 0
      %p108 = por %p106, %p107
      %s110 = sadd.s32 %s109, 1
      %p113 = scmp.eq.s32.totalorder %s12, 1
      %p114 = scmp.ne.s32.totalorder %s109, %s111
      %p115 = scmp.eq.s32.totalorder %s12, 0
      %p116 = por %p114, %p115
      %p117 = scmp.ne.s32.totalorder %s109, %s111
      %p118 = scmp.eq.s32.totalorder %s17, 1
      %p119 = por %p117, %p118
      %p120 = scmp.ne.s32.totalorder %s111, %s112
      %p121 = scmp.eq.s32.totalorder %s17, 0
      %p122 = por %p120, %p121
      %p123 = scmp.ne.s32.totalorder %s111, %s112
      %p124 = scmp.eq.s32.totalorder %s18, 1
      %p125 = por %p123, %p124
      %p127 = scmp.ne.s32.totalorder %s112, %s126
      %p128 = scmp.eq.s32.totalorder %s18, 0
      %p129 = por %p127, %p128
      %s130 = ssub.s32 %s12, %s19
      %p131 = scmp.eq.s32.totalorder %s130, 0
      %s133 = sadd.s32 %s132, 1
      %s134 = scalar_select %p131, %s132, %s133
      %p137 = pneg %p131
      %p138 = scmp.eq.s32.totalorder %s12, 1
      %p139 = por %p137, %p138
      %p140 = scmp.ne.s32.totalorder %s132, %s135
      %p141 = scmp.eq.s32.totalorder %s12, 0
      %p142 = por %p140, %p141
      %p143 = scmp.ne.s32.totalorder %s132, %s135
      %p144 = scmp.eq.s32.totalorder %s17, 1
      %p145 = por %p143, %p144
      %p146 = scmp.ne.s32.totalorder %s135, %s136
      %p147 = scmp.eq.s32.totalorder %s17, 0
      %p148 = por %p146, %p147
      %p149 = scmp.ne.s32.totalorder %s135, %s136
      %p150 = scmp.eq.s32.totalorder %s18, 1
      %p151 = por %p149, %p150
      %p153 = scmp.ne.s32.totalorder %s136, %s152
      %p154 = scmp.eq.s32.totalorder %s18, 0
      %p155 = por %p153, %p154
      %p156 = scmp.le.s32.totalorder 1, %s12
      %p157 = scmp.lt.s32.totalorder %s12, 3
      %p158 = pnand %p156, %p157
      %p159 = pneg %p158
      // Predicated region
      $region9: #{model_forward.1} parent=5 // pred_check
        _
      $region10: #{model_forward.1} parent=5 // pred_check_branch
        %161 = sbr.rel (%p158) target = $region12
      $region11: #{model_forward.1} parent=5 // pred_region
        %s162 = ssub.s32 %s12, 1
        // Predicated region
        $region13: #{model_forward.1} parent=11 // pred_check
          %p163 = pneg %p59
        $region14: #{model_forward.1} parent=11 // pred_check_branch
          %165 = sbr.rel (%p163) target = $region16
        $region15: #{model_forward.1} parent=11 // pred_region
          %s167 = ssub.s32 24576, 24576
          %168 = vsyncadd [#allocation3], %s167
          %s169 = sshll.u32 [#allocation2], 4
          %s170 = int_to_ptr.vmem [resolvable:$true] %s169
          %175 = dma.hbm_to_vmem [thread:$0]  %s1, 24576, %s170, [#allocation3], 256, 256, 16
        $region16: #{model_forward.1} parent=11 // pred_fallthru
          _
        // Predicated region
        $region17: #{model_forward.1} parent=11 // pred_check
          %p176 = pneg %p80
        $region18: #{model_forward.1} parent=11 // pred_check_branch
          %178 = sbr.rel (%p176) target = $region20
        $region19: #{model_forward.1} parent=11 // pred_region
          _
        $region20: #{model_forward.1} parent=11 // pred_fallthru
          _
        // Predicated region
        $region21: #{model_forward.1} parent=11 // pred_check
          %p179 = pneg %p101
        $region22: #{model_forward.1} parent=11 // pred_check_branch
          %181 = sbr.rel (%p179) target = $region24
        $region23: #{model_forward.1} parent=11 // pred_region
          _
        $region24: #{model_forward.1} parent=11 // pred_fallthru
          _
        // Predicated region
        $region25: #{model_forward.1} parent=11 // pred_check
          %p182 = pneg %p122
        $region26: #{model_forward.1} parent=11 // pred_check_branch
          %184 = sbr.rel (%p182) target = $region28
        $region27: #{model_forward.1} parent=11 // pred_region
          _
        $region28: #{model_forward.1} parent=11 // pred_fallthru
          _
      $region12: #{model_forward.1} parent=5 // pred_fallthru
        _
      %p185 = scmp.lt.s32.totalorder %s12, 2
      // Predicated region
      $region29: #{model_forward.1} parent=5 // pred_check
        %p186 = pneg %p185
      $region30: #{model_forward.1} parent=5 // pred_check_branch
        %188 = sbr.rel (%p186) target = $region32
      $region31: #{model_forward.1} parent=5 // pred_region
        // Predicated region
        $region33: #{model_forward.1} parent=31 // pred_check
          %p189 = pneg %p32
        $region34: #{model_forward.1} parent=31 // pred_check_branch
          %191 = sbr.rel (%p189) target = $region36
        $region35: #{model_forward.1} parent=31 // pred_region
          %p192 = scmp.lt.s32.totalorder %s12, 1
          %s193 = scalar_select %p192, %s12, 1
          %s194 = smul.addr %s193, 12
          %s195 = smul.addr %s194, 8
          %s196 = scalar_lea.vmem %s0, %s195
        $region36: #{model_forward.1} parent=31 // pred_fallthru
          _
      $region32: #{model_forward.1} parent=5 // pred_fallthru
        _
      %p197 = scmp.le.s32.totalorder 1, %s12
      %p198 = scmp.lt.s32.totalorder %s12, 3
      %p199 = pnand %p197, %p198
      %p200 = pneg %p199
      // Predicated region
      $region37: #{model_forward.1} parent=5 // pred_check
        _
      $region38: #{model_forward.1} parent=5 // pred_check_branch
        %202 = sbr.rel (%p199) target = $region40
      $region39: #{model_forward.1} parent=5 // pred_region
        %s203 = ssub.s32 %s12, 1
        // Predicated region
        $region41: #{model_forward.1} parent=39 // pred_check
          %p204 = pneg %p59
        $region42: #{model_forward.1} parent=39 // pred_check_branch
          %206 = sbr.rel (%p204) target = $region44
        $region43: #{model_forward.1} parent=39 // pred_region
          %207 = dma.done [#allocation3], 24576
        $region44: #{model_forward.1} parent=39 // pred_fallthru
          _
        %p208 = scmp.lt.s32.totalorder %s17, 1
        %s209 = scalar_select %p208, %s17, 1
        %s210 = smul.addr %s209, 12
        %s211 = smul.addr %s210, 8
        %s212 = scalar_lea.vmem %s0, %s211
        %p213 = pneg %p38
        %p214 = pneg %p35
        %p215 = pneg %p59
        %p216 = pneg %p56
        %p217 = pneg %p80
        %p218 = pneg %p77
        %p219 = pneg %p101
        %p220 = pneg %p98
        %p221 = pneg %p122
        %p222 = pneg %p119
        %p223 = pneg %p148
        %p224 = pneg %p145
        %p225 = scmp.lt.s32.totalorder %s17, 1
        %s226 = scalar_select %p225, %s17, 1
        %s227 = smul.addr %s226, 4
        %s228 = smul.addr %s227, 8
        %s229 = scalar_lea.vmem %s5, %s228
        %p230 = scmp.lt.s32.totalorder %s17, 1
        %s231 = scalar_select %p230, %s17, 1
        %s232 = smul.addr %s231, 12
        %s233 = smul.addr %s232, 8
        %s234 = scalar_lea.vmem %s0, %s233
        %p235 = scmp.lt.s32.totalorder %s17, 1
        %s236 = scalar_select %p235, %s17, 1
        %s237 = smul.addr %s236, 4
        %s238 = smul.addr %s237, 8
        %s239 = scalar_lea.vmem %s5, %s238
        %v240 = vld [vmem:[%s234] sm:$0xff]
        %v241 = vld [vmem:[%s234 + $0x8] sm:$0xff]
        %v242 = vld [vmem:[%s234 + $0x10] sm:$0xff]
        %v243 = vld [vmem:[%s234 + $0x18] sm:$0xff]
        %v244 = vld [vmem:[%s234 + $0x20] sm:$0xff]
        %v245 = vld [vmem:[%s234 + $0x28] sm:$0xff]
        %v246 = vld [vmem:[%s234 + $0x30] sm:$0xff]
        %v247 = vld [vmem:[%s234 + $0x38] sm:$0xff]
        %v248 = vld [vmem:[%s234 + $0x40] sm:$0xff]
        %v249 = vld [vmem:[%s234 + $0x48] sm:$0xff]
        %v250 = vld [vmem:[%s234 + $0x50] sm:$0xff]
        %v251 = vld [vmem:[%s234 + $0x58] sm:$0xff]
        %v252 = vpack.c.bf16 %v246, %v240
        %v253 = vpack.c.bf16 %v247, %v241
        %v254 = vpack.c.bf16 %v248, %v242
        %v255 = vpack.c.bf16 %v249, %v243
        %v256 = vpack.c.bf16 %v250, %v244
        %v257 = vpack.c.bf16 %v251, %v245
        %v258 = vld [vmem:[#allocation2] sm:$0xff]
        %v259 = vld [vmem:[#allocation2 + $0x8] sm:$0xff]
        %v260 = vld [vmem:[#allocation2 + $0x10] sm:$0xff]
        %v261 = vld [vmem:[#allocation2 + $0x18] sm:$0xff]
        %v262 = vld [vmem:[#allocation2 + $0x20] sm:$0xff]
        %v263 = vld [vmem:[#allocation2 + $0x28] sm:$0xff]
        %v264 = vld [vmem:[#allocation2 + $0x30] sm:$0xff]
        %v265 = vld [vmem:[#allocation2 + $0x38] sm:$0xff]
        %v266 = vld [vmem:[#allocation2 + $0x40] sm:$0xff]
        %v267 = vld [vmem:[#allocation2 + $0x48] sm:$0xff]
        %v268 = vld [vmem:[#allocation2 + $0x50] sm:$0xff]
        %v269 = vld [vmem:[#allocation2 + $0x58] sm:$0xff]
        %v270 = vld [vmem:[#allocation2 + $0x60] sm:$0xff]
        %v271 = vld [vmem:[#allocation2 + $0x68] sm:$0xff]
        %v272 = vld [vmem:[#allocation2 + $0x70] sm:$0xff]
        %v273 = vld [vmem:[#allocation2 + $0x78] sm:$0xff]
        %v274 = vld [vmem:[#allocation2 + $0x80] sm:$0xff]
        %v275 = vld [vmem:[#allocation2 + $0x88] sm:$0xff]
        %v276 = vld [vmem:[#allocation2 + $0x90] sm:$0xff]
        %v277 = vld [vmem:[#allocation2 + $0x98] sm:$0xff]
        %v278 = vld [vmem:[#allocation2 + $0xa0] sm:$0xff]
        %v279 = vld [vmem:[#allocation2 + $0xa8] sm:$0xff]
        %v280 = vld [vmem:[#allocation2 + $0xb0] sm:$0xff]
        %v281 = vld [vmem:[#allocation2 + $0xb8] sm:$0xff]
        %v282 = vld [vmem:[#allocation2 + $0xc0] sm:$0xff]
        %v283 = vld [vmem:[#allocation2 + $0xc8] sm:$0xff]
        %v284 = vld [vmem:[#allocation2 + $0xd0] sm:$0xff]
        %v285 = vld [vmem:[#allocation2 + $0xd8] sm:$0xff]
        %v286 = vld [vmem:[#allocation2 + $0xe0] sm:$0xff]
        %v287 = vld [vmem:[#allocation2 + $0xe8] sm:$0xff]
        %v288 = vld [vmem:[#allocation2 + $0xf0] sm:$0xff]
        %v289 = vld [vmem:[#allocation2 + $0xf8] sm:$0xff]
        %v290 = vld [vmem:[#allocation2 + $0x100] sm:$0xff]
        %v291 = vld [vmem:[#allocation2 + $0x108] sm:$0xff]
        %v292 = vld [vmem:[#allocation2 + $0x110] sm:$0xff]
        %v293 = vld [vmem:[#allocation2 + $0x118] sm:$0xff]
        %v294 = vld [vmem:[#allocation2 + $0x120] sm:$0xff]
        %v295 = vld [vmem:[#allocation2 + $0x128] sm:$0xff]
        %v296 = vld [vmem:[#allocation2 + $0x130] sm:$0xff]
        %v297 = vld [vmem:[#allocation2 + $0x138] sm:$0xff]
        %v298 = vld [vmem:[#allocation2 + $0x140] sm:$0xff]
        %v299 = vld [vmem:[#allocation2 + $0x148] sm:$0xff]
        %v300 = vld [vmem:[#allocation2 + $0x150] sm:$0xff]
        %v301 = vld [vmem:[#allocation2 + $0x158] sm:$0xff]
        %v302 = vld [vmem:[#allocation2 + $0x160] sm:$0xff]
        %v303 = vld [vmem:[#allocation2 + $0x168] sm:$0xff]
        %v304 = vld [vmem:[#allocation2 + $0x170] sm:$0xff]
        %v305 = vld [vmem:[#allocation2 + $0x178] sm:$0xff]
        %v306 = vld [vmem:[#allocation2 + $0x180] sm:$0xff]
        %v307 = vld [vmem:[#allocation2 + $0x188] sm:$0xff]
        %v308 = vld [vmem:[#allocation2 + $0x190] sm:$0xff]
        %v309 = vld [vmem:[#allocation2 + $0x198] sm:$0xff]
        %v310 = vld [vmem:[#allocation2 + $0x1a0] sm:$0xff]
        %v311 = vld [vmem:[#allocation2 + $0x1a8] sm:$0xff]
        %v312 = vld [vmem:[#allocation2 + $0x1b0] sm:$0xff]
        %v313 = vld [vmem:[#allocation2 + $0x1b8] sm:$0xff]
        %v314 = vld [vmem:[#allocation2 + $0x1c0] sm:$0xff]
        %v315 = vld [vmem:[#allocation2 + $0x1c8] sm:$0xff]
        %v316 = vld [vmem:[#allocation2 + $0x1d0] sm:$0xff]
        %v317 = vld [vmem:[#allocation2 + $0x1d8] sm:$0xff]
        %v318 = vld [vmem:[#allocation2 + $0x1e0] sm:$0xff]
        %v319 = vld [vmem:[#allocation2 + $0x1e8] sm:$0xff]
        %v320 = vld [vmem:[#allocation2 + $0x1f0] sm:$0xff]
        %v321 = vld [vmem:[#allocation2 + $0x1f8] sm:$0xff]
        %v322 = vld [vmem:[#allocation2 + $0x200] sm:$0xff]
        %v323 = vld [vmem:[#allocation2 + $0x208] sm:$0xff]
        %v324 = vld [vmem:[#allocation2 + $0x210] sm:$0xff]
        %v325 = vld [vmem:[#allocation2 + $0x218] sm:$0xff]
        %v326 = vld [vmem:[#allocation2 + $0x220] sm:$0xff]
        %v327 = vld [vmem:[#allocation2 + $0x228] sm:$0xff]
        %v328 = vld [vmem:[#allocation2 + $0x230] sm:$0xff]
        %v329 = vld [vmem:[#allocation2 + $0x238] sm:$0xff]
        %v330 = vld [vmem:[#allocation2 + $0x240] sm:$0xff]
        %v331 = vld [vmem:[#allocation2 + $0x248] sm:$0xff]
        %v332 = vld [vmem:[#allocation2 + $0x250] sm:$0xff]
        %v333 = vld [vmem:[#allocation2 + $0x258] sm:$0xff]
        %v334 = vld [vmem:[#allocation2 + $0x260] sm:$0xff]
        %v335 = vld [vmem:[#allocation2 + $0x268] sm:$0xff]
        %v336 = vld [vmem:[#allocation2 + $0x270] sm:$0xff]
        %v337 = vld [vmem:[#allocation2 + $0x278] sm:$0xff]
        %v338 = vld [vmem:[#allocation2 + $0x280] sm:$0xff]
        %v339 = vld [vmem:[#allocation2 + $0x288] sm:$0xff]
        %v340 = vld [vmem:[#allocation2 + $0x290] sm:$0xff]
        %v341 = vld [vmem:[#allocation2 + $0x298] sm:$0xff]
        %v342 = vld [vmem:[#allocation2 + $0x2a0] sm:$0xff]
        %v343 = vld [vmem:[#allocation2 + $0x2a8] sm:$0xff]
        %v344 = vld [vmem:[#allocation2 + $0x2b0] sm:$0xff]
        %v345 = vld [vmem:[#allocation2 + $0x2b8] sm:$0xff]
        %v346 = vld [vmem:[#allocation2 + $0x2c0] sm:$0xff]
        %v347 = vld [vmem:[#allocation2 + $0x2c8] sm:$0xff]
        %v348 = vld [vmem:[#allocation2 + $0x2d0] sm:$0xff]
        %v349 = vld [vmem:[#allocation2 + $0x2d8] sm:$0xff]
        %v350 = vld [vmem:[#allocation2 + $0x2e0] sm:$0xff]
        %v351 = vld [vmem:[#allocation2 + $0x2e8] sm:$0xff]
        %v352 = vld [vmem:[#allocation2 + $0x2f0] sm:$0xff]
        %v353 = vld [vmem:[#allocation2 + $0x2f8] sm:$0xff]
        %v354 = vld [vmem:[#allocation2 + $0x300] sm:$0xff]
        %v355 = vld [vmem:[#allocation2 + $0x308] sm:$0xff]
        %v356 = vld [vmem:[#allocation2 + $0x310] sm:$0xff]
        %v357 = vld [vmem:[#allocation2 + $0x318] sm:$0xff]
        %v358 = vld [vmem:[#allocation2 + $0x320] sm:$0xff]
        %v359 = vld [vmem:[#allocation2 + $0x328] sm:$0xff]
        %v360 = vld [vmem:[#allocation2 + $0x330] sm:$0xff]
        %v361 = vld [vmem:[#allocation2 + $0x338] sm:$0xff]
        %v362 = vld [vmem:[#allocation2 + $0x340] sm:$0xff]
        %v363 = vld [vmem:[#allocation2 + $0x348] sm:$0xff]
        %v364 = vld [vmem:[#allocation2 + $0x350] sm:$0xff]
        %v365 = vld [vmem:[#allocation2 + $0x358] sm:$0xff]
        %v366 = vld [vmem:[#allocation2 + $0x360] sm:$0xff]
        %v367 = vld [vmem:[#allocation2 + $0x368] sm:$0xff]
        %v368 = vld [vmem:[#allocation2 + $0x370] sm:$0xff]
        %v369 = vld [vmem:[#allocation2 + $0x378] sm:$0xff]
        %v370 = vld [vmem:[#allocation2 + $0x380] sm:$0xff]
        %v371 = vld [vmem:[#allocation2 + $0x388] sm:$0xff]
        %v372 = vld [vmem:[#allocation2 + $0x390] sm:$0xff]
        %v373 = vld [vmem:[#allocation2 + $0x398] sm:$0xff]
        %v374 = vld [vmem:[#allocation2 + $0x3a0] sm:$0xff]
        %v375 = vld [vmem:[#allocation2 + $0x3a8] sm:$0xff]
        %v376 = vld [vmem:[#allocation2 + $0x3b0] sm:$0xff]
        %v377 = vld [vmem:[#allocation2 + $0x3b8] sm:$0xff]
        %v378 = vld [vmem:[#allocation2 + $0x3c0] sm:$0xff]
        %v379 = vld [vmem:[#allocation2 + $0x3c8] sm:$0xff]
        %v380 = vld [vmem:[#allocation2 + $0x3d0] sm:$0xff]
        %v381 = vld [vmem:[#allocation2 + $0x3d8] sm:$0xff]
        %v382 = vld [vmem:[#allocation2 + $0x3e0] sm:$0xff]
        %v383 = vld [vmem:[#allocation2 + $0x3e8] sm:$0xff]
        %v384 = vld [vmem:[#allocation2 + $0x3f0] sm:$0xff]
        %v385 = vld [vmem:[#allocation2 + $0x3f8] sm:$0xff]
        %v386 = vld [vmem:[#allocation2 + $0x400] sm:$0xff]
        %v387 = vld [vmem:[#allocation2 + $0x408] sm:$0xff]
        %v388 = vld [vmem:[#allocation2 + $0x410] sm:$0xff]
        %v389 = vld [vmem:[#allocation2 + $0x418] sm:$0xff]
        %v390 = vld [vmem:[#allocation2 + $0x420] sm:$0xff]
        %v391 = vld [vmem:[#allocation2 + $0x428] sm:$0xff]
        %v392 = vld [vmem:[#allocation2 + $0x430] sm:$0xff]
        %v393 = vld [vmem:[#allocation2 + $0x438] sm:$0xff]
        %v394 = vld [vmem:[#allocation2 + $0x440] sm:$0xff]
        %v395 = vld [vmem:[#allocation2 + $0x448] sm:$0xff]
        %v396 = vld [vmem:[#allocation2 + $0x450] sm:$0xff]
        %v397 = vld [vmem:[#allocation2 + $0x458] sm:$0xff]
        %v398 = vld [vmem:[#allocation2 + $0x460] sm:$0xff]
        %v399 = vld [vmem:[#allocation2 + $0x468] sm:$0xff]
        %v400 = vld [vmem:[#allocation2 + $0x470] sm:$0xff]
        %v401 = vld [vmem:[#allocation2 + $0x478] sm:$0xff]
        %v402 = vld [vmem:[#allocation2 + $0x480] sm:$0xff]
        %v403 = vld [vmem:[#allocation2 + $0x488] sm:$0xff]
        %v404 = vld [vmem:[#allocation2 + $0x490] sm:$0xff]
        %v405 = vld [vmem:[#allocation2 + $0x498] sm:$0xff]
        %v406 = vld [vmem:[#allocation2 + $0x4a0] sm:$0xff]
        %v407 = vld [vmem:[#allocation2 + $0x4a8] sm:$0xff]
        %v408 = vld [vmem:[#allocation2 + $0x4b0] sm:$0xff]
        %v409 = vld [vmem:[#allocation2 + $0x4b8] sm:$0xff]
        %v410 = vld [vmem:[#allocation2 + $0x4c0] sm:$0xff]
        %v411 = vld [vmem:[#allocation2 + $0x4c8] sm:$0xff]
        %v412 = vld [vmem:[#allocation2 + $0x4d0] sm:$0xff]
        %v413 = vld [vmem:[#allocation2 + $0x4d8] sm:$0xff]
        %v414 = vld [vmem:[#allocation2 + $0x4e0] sm:$0xff]
        %v415 = vld [vmem:[#allocation2 + $0x4e8] sm:$0xff]
        %v416 = vld [vmem:[#allocation2 + $0x4f0] sm:$0xff]
        %v417 = vld [vmem:[#allocation2 + $0x4f8] sm:$0xff]
        %v418 = vld [vmem:[#allocation2 + $0x500] sm:$0xff]
        %v419 = vld [vmem:[#allocation2 + $0x508] sm:$0xff]
        %v420 = vld [vmem:[#allocation2 + $0x510] sm:$0xff]
        %v421 = vld [vmem:[#allocation2 + $0x518] sm:$0xff]
        %v422 = vld [vmem:[#allocation2 + $0x520] sm:$0xff]
        %v423 = vld [vmem:[#allocation2 + $0x528] sm:$0xff]
        %v424 = vld [vmem:[#allocation2 + $0x530] sm:$0xff]
        %v425 = vld [vmem:[#allocation2 + $0x538] sm:$0xff]
        %v426 = vld [vmem:[#allocation2 + $0x540] sm:$0xff]
        %v427 = vld [vmem:[#allocation2 + $0x548] sm:$0xff]
        %v428 = vld [vmem:[#allocation2 + $0x550] sm:$0xff]
        %v429 = vld [vmem:[#allocation2 + $0x558] sm:$0xff]
        %v430 = vld [vmem:[#allocation2 + $0x560] sm:$0xff]
        %v431 = vld [vmem:[#allocation2 + $0x568] sm:$0xff]
        %v432 = vld [vmem:[#allocation2 + $0x570] sm:$0xff]
        %v433 = vld [vmem:[#allocation2 + $0x578] sm:$0xff]
        %v434 = vld [vmem:[#allocation2 + $0x580] sm:$0xff]
        %v435 = vld [vmem:[#allocation2 + $0x588] sm:$0xff]
        %v436 = vld [vmem:[#allocation2 + $0x590] sm:$0xff]
        %v437 = vld [vmem:[#allocation2 + $0x598] sm:$0xff]
        %v438 = vld [vmem:[#allocation2 + $0x5a0] sm:$0xff]
        %v439 = vld [vmem:[#allocation2 + $0x5a8] sm:$0xff]
        %v440 = vld [vmem:[#allocation2 + $0x5b0] sm:$0xff]
        %v441 = vld [vmem:[#allocation2 + $0x5b8] sm:$0xff]
        %v442 = vld [vmem:[#allocation2 + $0x5c0] sm:$0xff]
        %v443 = vld [vmem:[#allocation2 + $0x5c8] sm:$0xff]
        %v444 = vld [vmem:[#allocation2 + $0x5d0] sm:$0xff]
        %v445 = vld [vmem:[#allocation2 + $0x5d8] sm:$0xff]
        %v446 = vld [vmem:[#allocation2 + $0x5e0] sm:$0xff]
        %v447 = vld [vmem:[#allocation2 + $0x5e8] sm:$0xff]
        %v448 = vld [vmem:[#allocation2 + $0x5f0] sm:$0xff]
        %v449 = vld [vmem:[#allocation2 + $0x5f8] sm:$0xff]
        %v450 = vld [vmem:[%s2] sm:$0xf]
        %v451 = vld [vmem:[%s3] sm:$0xff]
        %v452 = vld [vmem:[%s3 + $0x8] sm:$0xff]
        %v453 = vld [vmem:[%s3 + $0x10] sm:$0xff]
        %v454 = vld [vmem:[%s3 + $0x18] sm:$0xff]
        %v455 = vld [vmem:[%s3 + $0x20] sm:$0xff]
        %v456 = vld [vmem:[%s3 + $0x28] sm:$0xff]
        %v457 = vld [vmem:[%s3 + $0x30] sm:$0xff]
        %v458 = vld [vmem:[%s3 + $0x38] sm:$0xff]
        %v459 = vld [vmem:[%s3 + $0x40] sm:$0xff]
        %v460 = vld [vmem:[%s3 + $0x48] sm:$0xff]
        %v461 = vld [vmem:[%s3 + $0x50] sm:$0xff]
        %v462 = vld [vmem:[%s3 + $0x58] sm:$0xff]
        %v463 = vld [vmem:[%s3 + $0x60] sm:$0xff]
        %v464 = vld [vmem:[%s3 + $0x68] sm:$0xff]
        %v465 = vld [vmem:[%s3 + $0x70] sm:$0xff]
        %v466 = vld [vmem:[%s3 + $0x78] sm:$0xff]
        %v467 = vld [vmem:[%s3 + $0x80] sm:$0xff]
        %v468 = vld [vmem:[%s3 + $0x88] sm:$0xff]
        %v469 = vld [vmem:[%s3 + $0x90] sm:$0xff]
        %v470 = vld [vmem:[%s3 + $0x98] sm:$0xff]
        %v471 = vld [vmem:[%s3 + $0xa0] sm:$0xff]
        %v472 = vld [vmem:[%s3 + $0xa8] sm:$0xff]
        %v473 = vld [vmem:[%s3 + $0xb0] sm:$0xff]
        %v474 = vld [vmem:[%s3 + $0xb8] sm:$0xff]
        %v475 = vld [vmem:[%s3 + $0xc0] sm:$0xff]
        %v476 = vld [vmem:[%s3 + $0xc8] sm:$0xff]
        %v477 = vld [vmem:[%s3 + $0xd0] sm:$0xff]
        %v478 = vld [vmem:[%s3 + $0xd8] sm:$0xff]
        %v479 = vld [vmem:[%s3 + $0xe0] sm:$0xff]
        %v480 = vld [vmem:[%s3 + $0xe8] sm:$0xff]
        %v481 = vld [vmem:[%s3 + $0xf0] sm:$0xff]
        %v482 = vld [vmem:[%s3 + $0xf8] sm:$0xff]
        %v483 = vld [vmem:[%s3 + $0x100] sm:$0xff]
        %v484 = vld [vmem:[%s3 + $0x108] sm:$0xff]
        %v485 = vld [vmem:[%s3 + $0x110] sm:$0xff]
        %v486 = vld [vmem:[%s3 + $0x118] sm:$0xff]
        %v487 = vld [vmem:[%s3 + $0x120] sm:$0xff]
        %v488 = vld [vmem:[%s3 + $0x128] sm:$0xff]
        %v489 = vld [vmem:[%s3 + $0x130] sm:$0xff]
        %v490 = vld [vmem:[%s3 + $0x138] sm:$0xff]
        %v491 = vld [vmem:[%s3 + $0x140] sm:$0xff]
        %v492 = vld [vmem:[%s3 + $0x148] sm:$0xff]
        %v493 = vld [vmem:[%s3 + $0x150] sm:$0xff]
        %v494 = vld [vmem:[%s3 + $0x158] sm:$0xff]
        %v495 = vld [vmem:[%s3 + $0x160] sm:$0xff]
        %v496 = vld [vmem:[%s3 + $0x168] sm:$0xff]
        %v497 = vld [vmem:[%s3 + $0x170] sm:$0xff]
        %v498 = vld [vmem:[%s3 + $0x178] sm:$0xff]
        %v499 = vld [vmem:[%s3 + $0x180] sm:$0xff]
        %v500 = vld [vmem:[%s3 + $0x188] sm:$0xff]
        %v501 = vld [vmem:[%s3 + $0x190] sm:$0xff]
        %v502 = vld [vmem:[%s3 + $0x198] sm:$0xff]
        %v503 = vld [vmem:[%s3 + $0x1a0] sm:$0xff]
        %v504 = vld [vmem:[%s3 + $0x1a8] sm:$0xff]
        %v505 = vld [vmem:[%s3 + $0x1b0] sm:$0xff]
        %v506 = vld [vmem:[%s3 + $0x1b8] sm:$0xff]
        %v507 = vld [vmem:[%s3 + $0x1c0] sm:$0xff]
        %v508 = vld [vmem:[%s3 + $0x1c8] sm:$0xff]
        %v509 = vld [vmem:[%s3 + $0x1d0] sm:$0xff]
        %v510 = vld [vmem:[%s3 + $0x1d8] sm:$0xff]
        %v511 = vld [vmem:[%s3 + $0x1e0] sm:$0xff]
        %v512 = vld [vmem:[%s3 + $0x1e8] sm:$0xff]
        %v513 = vld [vmem:[%s3 + $0x1f0] sm:$0xff]
        %v514 = vld [vmem:[%s3 + $0x1f8] sm:$0xff]
        %v515 = vld [vmem:[%s4] sm:$0x3]
        %v517 = vlaneseq
        %v518 = vshrl.u32 %v517, 7
        %v519 = vsub.s32 0, %v518
        %v520 = vrot.slane %v450, %v519
        %v521 = vlaneseq
        %v522 = vshrl.u32 %v521, 7
        %v523 = vsub.s32 1, %v522
        %v524 = vrot.slane %v450, %v523
        %v525 = vlaneseq
        %v526 = vshrl.u32 %v525, 7
        %v527 = vsub.s32 2, %v526
        %v528 = vrot.slane %v450, %v527
        %v529 = vlaneseq
        %v530 = vshrl.u32 %v529, 7
        %v531 = vsub.s32 3, %v530
        %v532 = vrot.slane %v450, %v531
        %v729 = vunpack.c.l.b16 %v258
        %v730 = vunpack.c.h.b16 %v258
        %v731 = vunpack.c.l.b16 %v259
        %v732 = vunpack.c.h.b16 %v259
        %v733 = vunpack.c.l.b16 %v260
        %v734 = vunpack.c.h.b16 %v260
        %v735 = vunpack.c.l.b16 %v261
        %v736 = vunpack.c.h.b16 %v261
        %v737 = vunpack.c.l.b16 %v262
        %v738 = vunpack.c.h.b16 %v262
        %v739 = vunpack.c.l.b16 %v263
        %v740 = vunpack.c.h.b16 %v263
        %v741 = vunpack.c.l.b16 %v264
        %v742 = vunpack.c.h.b16 %v264
        %v743 = vunpack.c.l.b16 %v265
        %v744 = vunpack.c.h.b16 %v265
        %v745 = vunpack.c.l.b16 %v266
        %v746 = vunpack.c.h.b16 %v266
        %v747 = vunpack.c.l.b16 %v267
        %v748 = vunpack.c.h.b16 %v267
        %v749 = vunpack.c.l.b16 %v268
        %v750 = vunpack.c.h.b16 %v268
        %v751 = vunpack.c.l.b16 %v269
        %v752 = vunpack.c.h.b16 %v269
        %v753 = vunpack.c.l.b16 %v270
        %v754 = vunpack.c.h.b16 %v270
        %v755 = vunpack.c.l.b16 %v271
        %v756 = vunpack.c.h.b16 %v271
        %v757 = vunpack.c.l.b16 %v272
        %v758 = vunpack.c.h.b16 %v272
        %v759 = vunpack.c.l.b16 %v273
        %v760 = vunpack.c.h.b16 %v273
        %v761 = vunpack.c.l.b16 %v274
        %v762 = vunpack.c.h.b16 %v274
        %v763 = vunpack.c.l.b16 %v275
        %v764 = vunpack.c.h.b16 %v275
        %v765 = vunpack.c.l.b16 %v276
        %v766 = vunpack.c.h.b16 %v276
        %v767 = vunpack.c.l.b16 %v277
        %v768 = vunpack.c.h.b16 %v277
        %v769 = vunpack.c.l.b16 %v278
        %v770 = vunpack.c.h.b16 %v278
        %v771 = vunpack.c.l.b16 %v279
        %v772 = vunpack.c.h.b16 %v279
        %v773 = vunpack.c.l.b16 %v280
        %v774 = vunpack.c.h.b16 %v280
        %v775 = vunpack.c.l.b16 %v281
        %v776 = vunpack.c.h.b16 %v281
        %v777 = vunpack.c.l.b16 %v282
        %v778 = vunpack.c.h.b16 %v282
        %v779 = vunpack.c.l.b16 %v283
        %v780 = vunpack.c.h.b16 %v283
        %v781 = vunpack.c.l.b16 %v284
        %v782 = vunpack.c.h.b16 %v284
        %v783 = vunpack.c.l.b16 %v285
        %v784 = vunpack.c.h.b16 %v285
        %v785 = vunpack.c.l.b16 %v286
        %v786 = vunpack.c.h.b16 %v286
        %v787 = vunpack.c.l.b16 %v287
        %v788 = vunpack.c.h.b16 %v287
        %v789 = vunpack.c.l.b16 %v288
        %v790 = vunpack.c.h.b16 %v288
        %v791 = vunpack.c.l.b16 %v289
        %v792 = vunpack.c.h.b16 %v289
        %v793 = vunpack.c.l.b16 %v290
        %v794 = vunpack.c.h.b16 %v290
        %v795 = vunpack.c.l.b16 %v291
        %v796 = vunpack.c.h.b16 %v291
        %v797 = vunpack.c.l.b16 %v292
        %v798 = vunpack.c.h.b16 %v292
        %v799 = vunpack.c.l.b16 %v293
        %v800 = vunpack.c.h.b16 %v293
        %v801 = vunpack.c.l.b16 %v294
        %v802 = vunpack.c.h.b16 %v294
        %v803 = vunpack.c.l.b16 %v295
        %v804 = vunpack.c.h.b16 %v295
        %v805 = vunpack.c.l.b16 %v296
        %v806 = vunpack.c.h.b16 %v296
        %v807 = vunpack.c.l.b16 %v297
        %v808 = vunpack.c.h.b16 %v297
        %v809 = vunpack.c.l.b16 %v298
        %v810 = vunpack.c.h.b16 %v298
        %v811 = vunpack.c.l.b16 %v299
        %v812 = vunpack.c.h.b16 %v299
        %v813 = vunpack.c.l.b16 %v300
        %v814 = vunpack.c.h.b16 %v300
        %v815 = vunpack.c.l.b16 %v301
        %v816 = vunpack.c.h.b16 %v301
        %v817 = vunpack.c.l.b16 %v302
        %v818 = vunpack.c.h.b16 %v302
        %v819 = vunpack.c.l.b16 %v303
        %v820 = vunpack.c.h.b16 %v303
        %v821 = vunpack.c.l.b16 %v304
        %v822 = vunpack.c.h.b16 %v304
        %v823 = vunpack.c.l.b16 %v305
        %v824 = vunpack.c.h.b16 %v305
        %v825 = vunpack.c.l.b16 %v306
        %v826 = vunpack.c.h.b16 %v306
        %v827 = vunpack.c.l.b16 %v307
        %v828 = vunpack.c.h.b16 %v307
        %v829 = vunpack.c.l.b16 %v308
        %v830 = vunpack.c.h.b16 %v308
        %v831 = vunpack.c.l.b16 %v309
        %v832 = vunpack.c.h.b16 %v309
        %v833 = vunpack.c.l.b16 %v310
        %v834 = vunpack.c.h.b16 %v310
        %v835 = vunpack.c.l.b16 %v311
        %v836 = vunpack.c.h.b16 %v311
        %v837 = vunpack.c.l.b16 %v312
        %v838 = vunpack.c.h.b16 %v312
        %v839 = vunpack.c.l.b16 %v313
        %v840 = vunpack.c.h.b16 %v313
        %v841 = vunpack.c.l.b16 %v314
        %v842 = vunpack.c.h.b16 %v314
        %v843 = vunpack.c.l.b16 %v315
        %v844 = vunpack.c.h.b16 %v315
        %v845 = vunpack.c.l.b16 %v316
        %v846 = vunpack.c.h.b16 %v316
        %v847 = vunpack.c.l.b16 %v317
        %v848 = vunpack.c.h.b16 %v317
        %v849 = vunpack.c.l.b16 %v318
        %v850 = vunpack.c.h.b16 %v318
        %v851 = vunpack.c.l.b16 %v319
        %v852 = vunpack.c.h.b16 %v319
        %v853 = vunpack.c.l.b16 %v320
        %v854 = vunpack.c.h.b16 %v320
        %v855 = vunpack.c.l.b16 %v321
        %v856 = vunpack.c.h.b16 %v321
        %v857 = vunpack.c.l.b16 %v322
        %v858 = vunpack.c.h.b16 %v322
        %v859 = vunpack.c.l.b16 %v323
        %v860 = vunpack.c.h.b16 %v323
        %v861 = vunpack.c.l.b16 %v324
        %v862 = vunpack.c.h.b16 %v324
        %v863 = vunpack.c.l.b16 %v325
        %v864 = vunpack.c.h.b16 %v325
        %v865 = vunpack.c.l.b16 %v326
        %v866 = vunpack.c.h.b16 %v326
        %v867 = vunpack.c.l.b16 %v327
        %v868 = vunpack.c.h.b16 %v327
        %v869 = vunpack.c.l.b16 %v328
        %v870 = vunpack.c.h.b16 %v328
        %v871 = vunpack.c.l.b16 %v329
        %v872 = vunpack.c.h.b16 %v329
        %v873 = vunpack.c.l.b16 %v330
        %v874 = vunpack.c.h.b16 %v330
        %v875 = vunpack.c.l.b16 %v331
        %v876 = vunpack.c.h.b16 %v331
        %v877 = vunpack.c.l.b16 %v332
        %v878 = vunpack.c.h.b16 %v332
        %v879 = vunpack.c.l.b16 %v333
        %v880 = vunpack.c.h.b16 %v333
        %v881 = vunpack.c.l.b16 %v334
        %v882 = vunpack.c.h.b16 %v334
        %v883 = vunpack.c.l.b16 %v335
        %v884 = vunpack.c.h.b16 %v335
        %v885 = vunpack.c.l.b16 %v336
        %v886 = vunpack.c.h.b16 %v336
        %v887 = vunpack.c.l.b16 %v337
        %v888 = vunpack.c.h.b16 %v337
        %v889 = vunpack.c.l.b16 %v338
        %v890 = vunpack.c.h.b16 %v338
        %v891 = vunpack.c.l.b16 %v339
        %v892 = vunpack.c.h.b16 %v339
        %v893 = vunpack.c.l.b16 %v340
        %v894 = vunpack.c.h.b16 %v340
        %v895 = vunpack.c.l.b16 %v341
        %v896 = vunpack.c.h.b16 %v341
        %v897 = vunpack.c.l.b16 %v342
        %v898 = vunpack.c.h.b16 %v342
        %v899 = vunpack.c.l.b16 %v343
        %v900 = vunpack.c.h.b16 %v343
        %v901 = vunpack.c.l.b16 %v344
        %v902 = vunpack.c.h.b16 %v344
        %v903 = vunpack.c.l.b16 %v345
        %v904 = vunpack.c.h.b16 %v345
        %v905 = vunpack.c.l.b16 %v346
        %v906 = vunpack.c.h.b16 %v346
        %v907 = vunpack.c.l.b16 %v347
        %v908 = vunpack.c.h.b16 %v347
        %v909 = vunpack.c.l.b16 %v348
        %v910 = vunpack.c.h.b16 %v348
        %v911 = vunpack.c.l.b16 %v349
        %v912 = vunpack.c.h.b16 %v349
        %v913 = vunpack.c.l.b16 %v350
        %v914 = vunpack.c.h.b16 %v350
        %v915 = vunpack.c.l.b16 %v351
        %v916 = vunpack.c.h.b16 %v351
        %v917 = vunpack.c.l.b16 %v352
        %v918 = vunpack.c.h.b16 %v352
        %v919 = vunpack.c.l.b16 %v353
        %v920 = vunpack.c.h.b16 %v353
        %v921 = vunpack.c.l.b16 %v354
        %v922 = vunpack.c.h.b16 %v354
        %v923 = vunpack.c.l.b16 %v355
        %v924 = vunpack.c.h.b16 %v355
        %v925 = vunpack.c.l.b16 %v356
        %v926 = vunpack.c.h.b16 %v356
        %v927 = vunpack.c.l.b16 %v357
        %v928 = vunpack.c.h.b16 %v357
        %v929 = vunpack.c.l.b16 %v358
        %v930 = vunpack.c.h.b16 %v358
        %v931 = vunpack.c.l.b16 %v359
        %v932 = vunpack.c.h.b16 %v359
        %v933 = vunpack.c.l.b16 %v360
        %v934 = vunpack.c.h.b16 %v360
        %v935 = vunpack.c.l.b16 %v361
        %v936 = vunpack.c.h.b16 %v361
        %v937 = vunpack.c.l.b16 %v362
        %v938 = vunpack.c.h.b16 %v362
        %v939 = vunpack.c.l.b16 %v363
        %v940 = vunpack.c.h.b16 %v363
        %v941 = vunpack.c.l.b16 %v364
        %v942 = vunpack.c.h.b16 %v364
        %v943 = vunpack.c.l.b16 %v365
        %v944 = vunpack.c.h.b16 %v365
        %v945 = vunpack.c.l.b16 %v366
        %v946 = vunpack.c.h.b16 %v366
        %v947 = vunpack.c.l.b16 %v367
        %v948 = vunpack.c.h.b16 %v367
        %v949 = vunpack.c.l.b16 %v368
        %v950 = vunpack.c.h.b16 %v368
        %v951 = vunpack.c.l.b16 %v369
        %v952 = vunpack.c.h.b16 %v369
        %v953 = vunpack.c.l.b16 %v370
        %v954 = vunpack.c.h.b16 %v370
        %v955 = vunpack.c.l.b16 %v371
        %v956 = vunpack.c.h.b16 %v371
        %v957 = vunpack.c.l.b16 %v372
        %v958 = vunpack.c.h.b16 %v372
        %v959 = vunpack.c.l.b16 %v373
        %v960 = vunpack.c.h.b16 %v373
        %v961 = vunpack.c.l.b16 %v374
        %v962 = vunpack.c.h.b16 %v374
        %v963 = vunpack.c.l.b16 %v375
        %v964 = vunpack.c.h.b16 %v375
        %v965 = vunpack.c.l.b16 %v376
        %v966 = vunpack.c.h.b16 %v376
        %v967 = vunpack.c.l.b16 %v377
        %v968 = vunpack.c.h.b16 %v377
        %v969 = vunpack.c.l.b16 %v378
        %v970 = vunpack.c.h.b16 %v378
        %v971 = vunpack.c.l.b16 %v379
        %v972 = vunpack.c.h.b16 %v379
        %v973 = vunpack.c.l.b16 %v380
        %v974 = vunpack.c.h.b16 %v380
        %v975 = vunpack.c.l.b16 %v381
        %v976 = vunpack.c.h.b16 %v381
        %v977 = vunpack.c.l.b16 %v382
        %v978 = vunpack.c.h.b16 %v382
        %v979 = vunpack.c.l.b16 %v383
        %v980 = vunpack.c.h.b16 %v383
        %v981 = vunpack.c.l.b16 %v384
        %v982 = vunpack.c.h.b16 %v384
        %v983 = vunpack.c.l.b16 %v385
        %v984 = vunpack.c.h.b16 %v385
        %v985 = vunpack.c.l.b16 %v386
        %v986 = vunpack.c.h.b16 %v386
        %v987 = vunpack.c.l.b16 %v387
        %v988 = vunpack.c.h.b16 %v387
        %v989 = vunpack.c.l.b16 %v388
        %v990 = vunpack.c.h.b16 %v388
        %v991 = vunpack.c.l.b16 %v389
        %v992 = vunpack.c.h.b16 %v389
        %v993 = vunpack.c.l.b16 %v390
        %v994 = vunpack.c.h.b16 %v390
        %v995 = vunpack.c.l.b16 %v391
        %v996 = vunpack.c.h.b16 %v391
        %v997 = vunpack.c.l.b16 %v392
        %v998 = vunpack.c.h.b16 %v392
        %v999 = vunpack.c.l.b16 %v393
        %v1000 = vunpack.c.h.b16 %v393
        %v1001 = vunpack.c.l.b16 %v394
        %v1002 = vunpack.c.h.b16 %v394
        %v1003 = vunpack.c.l.b16 %v395
        %v1004 = vunpack.c.h.b16 %v395
        %v1005 = vunpack.c.l.b16 %v396
        %v1006 = vunpack.c.h.b16 %v396
        %v1007 = vunpack.c.l.b16 %v397
        %v1008 = vunpack.c.h.b16 %v397
        %v1009 = vunpack.c.l.b16 %v398
        %v1010 = vunpack.c.h.b16 %v398
        %v1011 = vunpack.c.l.b16 %v399
        %v1012 = vunpack.c.h.b16 %v399
        %v1013 = vunpack.c.l.b16 %v400
        %v1014 = vunpack.c.h.b16 %v400
        %v1015 = vunpack.c.l.b16 %v401
        %v1016 = vunpack.c.h.b16 %v401
        %v1017 = vunpack.c.l.b16 %v402
        %v1018 = vunpack.c.h.b16 %v402
        %v1019 = vunpack.c.l.b16 %v403
        %v1020 = vunpack.c.h.b16 %v403
        %v1021 = vunpack.c.l.b16 %v404
        %v1022 = vunpack.c.h.b16 %v404
        %v1023 = vunpack.c.l.b16 %v405
        %v1024 = vunpack.c.h.b16 %v405
        %v1025 = vunpack.c.l.b16 %v406
        %v1026 = vunpack.c.h.b16 %v406
        %v1027 = vunpack.c.l.b16 %v407
        %v1028 = vunpack.c.h.b16 %v407
        %v1029 = vunpack.c.l.b16 %v408
        %v1030 = vunpack.c.h.b16 %v408
        %v1031 = vunpack.c.l.b16 %v409
        %v1032 = vunpack.c.h.b16 %v409
        %v1033 = vunpack.c.l.b16 %v410
        %v1034 = vunpack.c.h.b16 %v410
        %v1035 = vunpack.c.l.b16 %v411
        %v1036 = vunpack.c.h.b16 %v411
        %v1037 = vunpack.c.l.b16 %v412
        %v1038 = vunpack.c.h.b16 %v412
        %v1039 = vunpack.c.l.b16 %v413
        %v1040 = vunpack.c.h.b16 %v413
        %v1041 = vunpack.c.l.b16 %v414
        %v1042 = vunpack.c.h.b16 %v414
        %v1043 = vunpack.c.l.b16 %v415
        %v1044 = vunpack.c.h.b16 %v415
        %v1045 = vunpack.c.l.b16 %v416
        %v1046 = vunpack.c.h.b16 %v416
        %v1047 = vunpack.c.l.b16 %v417
        %v1048 = vunpack.c.h.b16 %v417
        %v1049 = vunpack.c.l.b16 %v418
        %v1050 = vunpack.c.h.b16 %v418
        %v1051 = vunpack.c.l.b16 %v419
        %v1052 = vunpack.c.h.b16 %v419
        %v1053 = vunpack.c.l.b16 %v420
        %v1054 = vunpack.c.h.b16 %v420
        %v1055 = vunpack.c.l.b16 %v421
        %v1056 = vunpack.c.h.b16 %v421
        %v1057 = vunpack.c.l.b16 %v422
        %v1058 = vunpack.c.h.b16 %v422
        %v1059 = vunpack.c.l.b16 %v423
        %v1060 = vunpack.c.h.b16 %v423
        %v1061 = vunpack.c.l.b16 %v424
        %v1062 = vunpack.c.h.b16 %v424
        %v1063 = vunpack.c.l.b16 %v425
        %v1064 = vunpack.c.h.b16 %v425
        %v1065 = vunpack.c.l.b16 %v426
        %v1066 = vunpack.c.h.b16 %v426
        %v1067 = vunpack.c.l.b16 %v427
        %v1068 = vunpack.c.h.b16 %v427
        %v1069 = vunpack.c.l.b16 %v428
        %v1070 = vunpack.c.h.b16 %v428
        %v1071 = vunpack.c.l.b16 %v429
        %v1072 = vunpack.c.h.b16 %v429
        %v1073 = vunpack.c.l.b16 %v430
        %v1074 = vunpack.c.h.b16 %v430
        %v1075 = vunpack.c.l.b16 %v431
        %v1076 = vunpack.c.h.b16 %v431
        %v1077 = vunpack.c.l.b16 %v432
        %v1078 = vunpack.c.h.b16 %v432
        %v1079 = vunpack.c.l.b16 %v433
        %v1080 = vunpack.c.h.b16 %v433
        %v1081 = vunpack.c.l.b16 %v434
        %v1082 = vunpack.c.h.b16 %v434
        %v1083 = vunpack.c.l.b16 %v435
        %v1084 = vunpack.c.h.b16 %v435
        %v1085 = vunpack.c.l.b16 %v436
        %v1086 = vunpack.c.h.b16 %v436
        %v1087 = vunpack.c.l.b16 %v437
        %v1088 = vunpack.c.h.b16 %v437
        %v1089 = vunpack.c.l.b16 %v438
        %v1090 = vunpack.c.h.b16 %v438
        %v1091 = vunpack.c.l.b16 %v439
        %v1092 = vunpack.c.h.b16 %v439
        %v1093 = vunpack.c.l.b16 %v440
        %v1094 = vunpack.c.h.b16 %v440
        %v1095 = vunpack.c.l.b16 %v441
        %v1096 = vunpack.c.h.b16 %v441
        %v1097 = vunpack.c.l.b16 %v442
        %v1098 = vunpack.c.h.b16 %v442
        %v1099 = vunpack.c.l.b16 %v443
        %v1100 = vunpack.c.h.b16 %v443
        %v1101 = vunpack.c.l.b16 %v444
        %v1102 = vunpack.c.h.b16 %v444
        %v1103 = vunpack.c.l.b16 %v445
        %v1104 = vunpack.c.h.b16 %v445
        %v1105 = vunpack.c.l.b16 %v446
        %v1106 = vunpack.c.h.b16 %v446
        %v1107 = vunpack.c.l.b16 %v447
        %v1108 = vunpack.c.h.b16 %v447
        %v1109 = vunpack.c.l.b16 %v448
        %v1110 = vunpack.c.h.b16 %v448
        %v1111 = vunpack.c.l.b16 %v449
        %v1112 = vunpack.c.h.b16 %v449
        %v1113 = vpack.c.b16 %v733, %v729
        %v1114 = vpack.c.b16 %v734, %v730
        %v1115 = vpack.c.b16 %v735, %v731
        %v1116 = vpack.c.b16 %v736, %v732
        %v1117 = vpack.c.b16 %v741, %v737
        %v1118 = vpack.c.b16 %v742, %v738
        %v1119 = vpack.c.b16 %v743, %v739
        %v1120 = vpack.c.b16 %v744, %v740
        %v1121 = vpack.c.b16 %v749, %v745
        %v1122 = vpack.c.b16 %v750, %v746
        %v1123 = vpack.c.b16 %v751, %v747
        %v1124 = vpack.c.b16 %v752, %v748
        %v1125 = vpack.c.b16 %v757, %v753
        %v1126 = vpack.c.b16 %v758, %v754
        %v1127 = vpack.c.b16 %v759, %v755
        %v1128 = vpack.c.b16 %v760, %v756
        %v1129 = vpack.c.b16 %v765, %v761
        %v1130 = vpack.c.b16 %v766, %v762
        %v1131 = vpack.c.b16 %v767, %v763
        %v1132 = vpack.c.b16 %v768, %v764
        %v1133 = vpack.c.b16 %v773, %v769
        %v1134 = vpack.c.b16 %v774, %v770
        %v1135 = vpack.c.b16 %v775, %v771
        %v1136 = vpack.c.b16 %v776, %v772
        %v1137 = vpack.c.b16 %v781, %v777
        %v1138 = vpack.c.b16 %v782, %v778
        %v1139 = vpack.c.b16 %v783, %v779
        %v1140 = vpack.c.b16 %v784, %v780
        %v1141 = vpack.c.b16 %v789, %v785
        %v1142 = vpack.c.b16 %v790, %v786
        %v1143 = vpack.c.b16 %v791, %v787
        %v1144 = vpack.c.b16 %v792, %v788
        %v1145 = vpack.c.b16 %v797, %v793
        %v1146 = vpack.c.b16 %v798, %v794
        %v1147 = vpack.c.b16 %v799, %v795
        %v1148 = vpack.c.b16 %v800, %v796
        %v1149 = vpack.c.b16 %v805, %v801
        %v1150 = vpack.c.b16 %v806, %v802
        %v1151 = vpack.c.b16 %v807, %v803
        %v1152 = vpack.c.b16 %v808, %v804
        %v1153 = vpack.c.b16 %v813, %v809
        %v1154 = vpack.c.b16 %v814, %v810
        %v1155 = vpack.c.b16 %v815, %v811
        %v1156 = vpack.c.b16 %v816, %v812
        %v1157 = vpack.c.b16 %v821, %v817
        %v1158 = vpack.c.b16 %v822, %v818
        %v1159 = vpack.c.b16 %v823, %v819
        %v1160 = vpack.c.b16 %v824, %v820
        %v1161 = vpack.c.b16 %v829, %v825
        %v1162 = vpack.c.b16 %v830, %v826
        %v1163 = vpack.c.b16 %v831, %v827
        %v1164 = vpack.c.b16 %v832, %v828
        %v1165 = vpack.c.b16 %v837, %v833
        %v1166 = vpack.c.b16 %v838, %v834
        %v1167 = vpack.c.b16 %v839, %v835
        %v1168 = vpack.c.b16 %v840, %v836
        %v1169 = vpack.c.b16 %v845, %v841
        %v1170 = vpack.c.b16 %v846, %v842
        %v1171 = vpack.c.b16 %v847, %v843
        %v1172 = vpack.c.b16 %v848, %v844
        %v1173 = vpack.c.b16 %v853, %v849
        %v1174 = vpack.c.b16 %v854, %v850
        %v1175 = vpack.c.b16 %v855, %v851
        %v1176 = vpack.c.b16 %v856, %v852
        %v1177 = vpack.c.b16 %v861, %v857
        %v1178 = vpack.c.b16 %v862, %v858
        %v1179 = vpack.c.b16 %v863, %v859
        %v1180 = vpack.c.b16 %v864, %v860
        %v1181 = vpack.c.b16 %v869, %v865
        %v1182 = vpack.c.b16 %v870, %v866
        %v1183 = vpack.c.b16 %v871, %v867
        %v1184 = vpack.c.b16 %v872, %v868
        %v1185 = vpack.c.b16 %v877, %v873
        %v1186 = vpack.c.b16 %v878, %v874
        %v1187 = vpack.c.b16 %v879, %v875
        %v1188 = vpack.c.b16 %v880, %v876
        %v1189 = vpack.c.b16 %v885, %v881
        %v1190 = vpack.c.b16 %v886, %v882
        %v1191 = vpack.c.b16 %v887, %v883
        %v1192 = vpack.c.b16 %v888, %v884
        %v1193 = vpack.c.b16 %v893, %v889
        %v1194 = vpack.c.b16 %v894, %v890
        %v1195 = vpack.c.b16 %v895, %v891
        %v1196 = vpack.c.b16 %v896, %v892
        %v1197 = vpack.c.b16 %v901, %v897
        %v1198 = vpack.c.b16 %v902, %v898
        %v1199 = vpack.c.b16 %v903, %v899
        %v1200 = vpack.c.b16 %v904, %v900
        %v1201 = vpack.c.b16 %v909, %v905
        %v1202 = vpack.c.b16 %v910, %v906
        %v1203 = vpack.c.b16 %v911, %v907
        %v1204 = vpack.c.b16 %v912, %v908
        %v1205 = vpack.c.b16 %v917, %v913
        %v1206 = vpack.c.b16 %v918, %v914
        %v1207 = vpack.c.b16 %v919, %v915
        %v1208 = vpack.c.b16 %v920, %v916
        %v1209 = vpack.c.b16 %v925, %v921
        %v1210 = vpack.c.b16 %v926, %v922
        %v1211 = vpack.c.b16 %v927, %v923
        %v1212 = vpack.c.b16 %v928, %v924
        %v1213 = vpack.c.b16 %v933, %v929
        %v1214 = vpack.c.b16 %v934, %v930
        %v1215 = vpack.c.b16 %v935, %v931
        %v1216 = vpack.c.b16 %v936, %v932
        %v1217 = vpack.c.b16 %v941, %v937
        %v1218 = vpack.c.b16 %v942, %v938
        %v1219 = vpack.c.b16 %v943, %v939
        %v1220 = vpack.c.b16 %v944, %v940
        %v1221 = vpack.c.b16 %v949, %v945
        %v1222 = vpack.c.b16 %v950, %v946
        %v1223 = vpack.c.b16 %v951, %v947
        %v1224 = vpack.c.b16 %v952, %v948
        %v1225 = vpack.c.b16 %v957, %v953
        %v1226 = vpack.c.b16 %v958, %v954
        %v1227 = vpack.c.b16 %v959, %v955
        %v1228 = vpack.c.b16 %v960, %v956
        %v1229 = vpack.c.b16 %v965, %v961
        %v1230 = vpack.c.b16 %v966, %v962
        %v1231 = vpack.c.b16 %v967, %v963
        %v1232 = vpack.c.b16 %v968, %v964
        %v1233 = vpack.c.b16 %v973, %v969
        %v1234 = vpack.c.b16 %v974, %v970
        %v1235 = vpack.c.b16 %v975, %v971
        %v1236 = vpack.c.b16 %v976, %v972
        %v1237 = vpack.c.b16 %v981, %v977
        %v1238 = vpack.c.b16 %v982, %v978
        %v1239 = vpack.c.b16 %v983, %v979
        %v1240 = vpack.c.b16 %v984, %v980
        %v1241 = vpack.c.b16 %v989, %v985
        %v1242 = vpack.c.b16 %v990, %v986
        %v1243 = vpack.c.b16 %v991, %v987
        %v1244 = vpack.c.b16 %v992, %v988
        %v1245 = vpack.c.b16 %v997, %v993
        %v1246 = vpack.c.b16 %v998, %v994
        %v1247 = vpack.c.b16 %v999, %v995
        %v1248 = vpack.c.b16 %v1000, %v996
        %v1249 = vpack.c.b16 %v1005, %v1001
        %v1250 = vpack.c.b16 %v1006, %v1002
        %v1251 = vpack.c.b16 %v1007, %v1003
        %v1252 = vpack.c.b16 %v1008, %v1004
        %v1253 = vpack.c.b16 %v1013, %v1009
        %v1254 = vpack.c.b16 %v1014, %v1010
        %v1255 = vpack.c.b16 %v1015, %v1011
        %v1256 = vpack.c.b16 %v1016, %v1012
        %v1257 = vpack.c.b16 %v1021, %v1017
        %v1258 = vpack.c.b16 %v1022, %v1018
        %v1259 = vpack.c.b16 %v1023, %v1019
        %v1260 = vpack.c.b16 %v1024, %v1020
        %v1261 = vpack.c.b16 %v1029, %v1025
        %v1262 = vpack.c.b16 %v1030, %v1026
        %v1263 = vpack.c.b16 %v1031, %v1027
        %v1264 = vpack.c.b16 %v1032, %v1028
        %v1265 = vpack.c.b16 %v1037, %v1033
        %v1266 = vpack.c.b16 %v1038, %v1034
        %v1267 = vpack.c.b16 %v1039, %v1035
        %v1268 = vpack.c.b16 %v1040, %v1036
        %v1269 = vpack.c.b16 %v1045, %v1041
        %v1270 = vpack.c.b16 %v1046, %v1042
        %v1271 = vpack.c.b16 %v1047, %v1043
        %v1272 = vpack.c.b16 %v1048, %v1044
        %v1273 = vpack.c.b16 %v1053, %v1049
        %v1274 = vpack.c.b16 %v1054, %v1050
        %v1275 = vpack.c.b16 %v1055, %v1051
        %v1276 = vpack.c.b16 %v1056, %v1052
        %v1277 = vpack.c.b16 %v1061, %v1057
        %v1278 = vpack.c.b16 %v1062, %v1058
        %v1279 = vpack.c.b16 %v1063, %v1059
        %v1280 = vpack.c.b16 %v1064, %v1060
        %v1281 = vpack.c.b16 %v1069, %v1065
        %v1282 = vpack.c.b16 %v1070, %v1066
        %v1283 = vpack.c.b16 %v1071, %v1067
        %v1284 = vpack.c.b16 %v1072, %v1068
        %v1285 = vpack.c.b16 %v1077, %v1073
        %v1286 = vpack.c.b16 %v1078, %v1074
        %v1287 = vpack.c.b16 %v1079, %v1075
        %v1288 = vpack.c.b16 %v1080, %v1076
        %v1289 = vpack.c.b16 %v1085, %v1081
        %v1290 = vpack.c.b16 %v1086, %v1082
        %v1291 = vpack.c.b16 %v1087, %v1083
        %v1292 = vpack.c.b16 %v1088, %v1084
        %v1293 = vpack.c.b16 %v1093, %v1089
        %v1294 = vpack.c.b16 %v1094, %v1090
        %v1295 = vpack.c.b16 %v1095, %v1091
        %v1296 = vpack.c.b16 %v1096, %v1092
        %v1297 = vpack.c.b16 %v1101, %v1097
        %v1298 = vpack.c.b16 %v1102, %v1098
        %v1299 = vpack.c.b16 %v1103, %v1099
        %v1300 = vpack.c.b16 %v1104, %v1100
        %v1301 = vpack.c.b16 %v1109, %v1105
        %v1302 = vpack.c.b16 %v1110, %v1106
        %v1303 = vpack.c.b16 %v1111, %v1107
        %v1304 = vpack.c.b16 %v1112, %v1108
        %1497 = vmatprep.subr.bf16.mxu0 %v1114
        %1498 = vmatpush1.bf16.msra.mxu0 %v1113
        %1499 = vmatprep.subr.bf16.mxu0 %v1118
        %1500 = vmatpush1.bf16.msra.mxu0 %v1117
        %1501 = vmatprep.subr.bf16.mxu0 %v1122
        %1502 = vmatpush1.bf16.msra.mxu0 %v1121
        %1503 = vmatprep.subr.bf16.mxu0 %v1126
        %1504 = vmatpush1.bf16.msra.mxu0 %v1125
        %1505 = vmatprep.subr.bf16.mxu0 %v1130
        %1506 = vmatpush1.bf16.msra.mxu0 %v1129
        %1507 = vmatprep.subr.bf16.mxu0 %v1134
        %1508 = vmatpush1.bf16.msra.mxu0 %v1133
        %1509 = vmatprep.subr.bf16.mxu0 %v1138
        %1510 = vmatpush1.bf16.msra.mxu0 %v1137
        %1511 = vmatprep.subr.bf16.mxu0 %v1142
        %1512 = vmatpush1.bf16.msra.mxu0 %v1141
        %1513 = vmatprep.subr.bf16.mxu0 %v1146
        %1514 = vmatpush1.bf16.msra.mxu0 %v1145
        %1515 = vmatprep.subr.bf16.mxu0 %v1150
        %1516 = vmatpush1.bf16.msra.mxu0 %v1149
        %1517 = vmatprep.subr.bf16.mxu0 %v1154
        %1518 = vmatpush1.bf16.msra.mxu0 %v1153
        %1519 = vmatprep.subr.bf16.mxu0 %v1158
        %1520 = vmatpush1.bf16.msra.mxu0 %v1157
        %1521 = vmatprep.subr.bf16.mxu0 %v1162
        %1522 = vmatpush1.bf16.msra.mxu0 %v1161
        %1523 = vmatprep.subr.bf16.mxu0 %v1166
        %1524 = vmatpush1.bf16.msra.mxu0 %v1165
        %1525 = vmatprep.subr.bf16.mxu0 %v1170
        %1526 = vmatpush1.bf16.msra.mxu0 %v1169
        %1527 = vmatprep.subr.bf16.mxu0 %v1174
        %1528 = vmatpush1.bf16.msra.mxu0 %v1173
        %1529 = vmatprep.mubr.bf16.mxu0 %v253
        %1530 = vmatmul.mubr.bf16.gmra.mrb[0].mxu0 %v252
        %v1531 = vpop.f32.mrb[0].mxu0
        %v1532 = vadd.f32 %v520, %v1531
        %v1533 = vpop.f32.mrb[0].mxu0
        %v1534 = vadd.f32 %v524, %v1533
        %v1535 = vpop.f32.mrb[0].mxu0
        %v1536 = vadd.f32 %v520, %v1535
        %v1537 = vpop.f32.mrb[0].mxu0
        %v1538 = vadd.f32 %v524, %v1537
        %1539 = vdwg.mxu0
        %1540 = vmatprep.subr.bf16.mxu0 %v1178
        %1541 = vmatpush1.bf16.msra.mxu0 %v1177
        %1542 = vmatprep.subr.bf16.mxu0 %v1182
        %1543 = vmatpush1.bf16.msra.mxu0 %v1181
        %1544 = vmatprep.subr.bf16.mxu0 %v1186
        %1545 = vmatpush1.bf16.msra.mxu0 %v1185
        %1546 = vmatprep.subr.bf16.mxu0 %v1190
        %1547 = vmatpush1.bf16.msra.mxu0 %v1189
        %1548 = vmatprep.subr.bf16.mxu0 %v1194
        %1549 = vmatpush1.bf16.msra.mxu0 %v1193
        %1550 = vmatprep.subr.bf16.mxu0 %v1198
        %1551 = vmatpush1.bf16.msra.mxu0 %v1197
        %1552 = vmatprep.subr.bf16.mxu0 %v1202
        %1553 = vmatpush1.bf16.msra.mxu0 %v1201
        %1554 = vmatprep.subr.bf16.mxu0 %v1206
        %1555 = vmatpush1.bf16.msra.mxu0 %v1205
        %1556 = vmatprep.subr.bf16.mxu0 %v1210
        %1557 = vmatpush1.bf16.msra.mxu0 %v1209
        %1558 = vmatprep.subr.bf16.mxu0 %v1214
        %1559 = vmatpush1.bf16.msra.mxu0 %v1213
        %1560 = vmatprep.subr.bf16.mxu0 %v1218
        %1561 = vmatpush1.bf16.msra.mxu0 %v1217
        %1562 = vmatprep.subr.bf16.mxu0 %v1222
        %1563 = vmatpush1.bf16.msra.mxu0 %v1221
        %1564 = vmatprep.subr.bf16.mxu0 %v1226
        %1565 = vmatpush1.bf16.msra.mxu0 %v1225
        %1566 = vmatprep.subr.bf16.mxu0 %v1230
        %1567 = vmatpush1.bf16.msra.mxu0 %v1229
        %1568 = vmatprep.subr.bf16.mxu0 %v1234
        %1569 = vmatpush1.bf16.msra.mxu0 %v1233
        %1570 = vmatprep.subr.bf16.mxu0 %v1238
        %1571 = vmatpush1.bf16.msra.mxu0 %v1237
        %1572 = vmatprep.mubr.bf16.mxu0 %v255
        %1573 = vmatmul.mubr.bf16.gmra.mrb[0].mxu0 %v254
        %v1574 = vpop.f32.mrb[0].mxu0
        %v1575 = vadd.f32 %v1532, %v1574
        %v1576 = vpop.f32.mrb[0].mxu0
        %v1577 = vadd.f32 %v1534, %v1576
        %v1578 = vpop.f32.mrb[0].mxu0
        %v1579 = vadd.f32 %v1536, %v1578
        %v1580 = vpop.f32.mrb[0].mxu0
        %v1581 = vadd.f32 %v1538, %v1580
        %1582 = vdwg.mxu0
        %1583 = vmatprep.subr.bf16.mxu0 %v1242
        %1584 = vmatpush1.bf16.msra.mxu0 %v1241
        %1585 = vmatprep.subr.bf16.mxu0 %v1246
        %1586 = vmatpush1.bf16.msra.mxu0 %v1245
        %1587 = vmatprep.subr.bf16.mxu0 %v1250
        %1588 = vmatpush1.bf16.msra.mxu0 %v1249
        %1589 = vmatprep.subr.bf16.mxu0 %v1254
        %1590 = vmatpush1.bf16.msra.mxu0 %v1253
        %1591 = vmatprep.subr.bf16.mxu0 %v1258
        %1592 = vmatpush1.bf16.msra.mxu0 %v1257
        %1593 = vmatprep.subr.bf16.mxu0 %v1262
        %1594 = vmatpush1.bf16.msra.mxu0 %v1261
        %1595 = vmatprep.subr.bf16.mxu0 %v1266
        %1596 = vmatpush1.bf16.msra.mxu0 %v1265
        %1597 = vmatprep.subr.bf16.mxu0 %v1270
        %1598 = vmatpush1.bf16.msra.mxu0 %v1269
        %1599 = vmatprep.subr.bf16.mxu0 %v1274
        %1600 = vmatpush1.bf16.msra.mxu0 %v1273
        %1601 = vmatprep.subr.bf16.mxu0 %v1278
        %1602 = vmatpush1.bf16.msra.mxu0 %v1277
        %1603 = vmatprep.subr.bf16.mxu0 %v1282
        %1604 = vmatpush1.bf16.msra.mxu0 %v1281
        %1605 = vmatprep.subr.bf16.mxu0 %v1286
        %1606 = vmatpush1.bf16.msra.mxu0 %v1285
        %1607 = vmatprep.subr.bf16.mxu0 %v1290
        %1608 = vmatpush1.bf16.msra.mxu0 %v1289
        %1609 = vmatprep.subr.bf16.mxu0 %v1294
        %1610 = vmatpush1.bf16.msra.mxu0 %v1293
        %1611 = vmatprep.subr.bf16.mxu0 %v1298
        %1612 = vmatpush1.bf16.msra.mxu0 %v1297
        %1613 = vmatprep.subr.bf16.mxu0 %v1302
        %1614 = vmatpush1.bf16.msra.mxu0 %v1301
        %1615 = vmatprep.mubr.bf16.mxu0 %v257
        %1616 = vmatmul.mubr.bf16.gmra.mrb[0].mxu0 %v256
        %v1617 = vpop.f32.mrb[0].mxu0
        %v1618 = vadd.f32 %v1575, %v1617
        %v1619 = vpop.f32.mrb[0].mxu0
        %v1620 = vadd.f32 %v1577, %v1619
        %v1621 = vpop.f32.mrb[0].mxu0
        %v1622 = vadd.f32 %v1579, %v1621
        %v1623 = vpop.f32.mrb[0].mxu0
        %v1624 = vadd.f32 %v1581, %v1623
        %1625 = vdwg.mxu0
        %1626 = vmatprep.subr.bf16.mxu0 %v1116
        %1627 = vmatpush1.bf16.msra.mxu0 %v1115
        %1628 = vmatprep.subr.bf16.mxu0 %v1120
        %1629 = vmatpush1.bf16.msra.mxu0 %v1119
        %1630 = vmatprep.subr.bf16.mxu0 %v1124
        %1631 = vmatpush1.bf16.msra.mxu0 %v1123
        %1632 = vmatprep.subr.bf16.mxu0 %v1128
        %1633 = vmatpush1.bf16.msra.mxu0 %v1127
        %1634 = vmatprep.subr.bf16.mxu0 %v1132
        %1635 = vmatpush1.bf16.msra.mxu0 %v1131
        %1636 = vmatprep.subr.bf16.mxu0 %v1136
        %1637 = vmatpush1.bf16.msra.mxu0 %v1135
        %1638 = vmatprep.subr.bf16.mxu0 %v1140
        %1639 = vmatpush1.bf16.msra.mxu0 %v1139
        %1640 = vmatprep.subr.bf16.mxu0 %v1144
        %1641 = vmatpush1.bf16.msra.mxu0 %v1143
        %1642 = vmatprep.subr.bf16.mxu0 %v1148
        %1643 = vmatpush1.bf16.msra.mxu0 %v1147
        %1644 = vmatprep.subr.bf16.mxu0 %v1152
        %1645 = vmatpush1.bf16.msra.mxu0 %v1151
        %1646 = vmatprep.subr.bf16.mxu0 %v1156
        %1647 = vmatpush1.bf16.msra.mxu0 %v1155
        %1648 = vmatprep.subr.bf16.mxu0 %v1160
        %1649 = vmatpush1.bf16.msra.mxu0 %v1159
        %1650 = vmatprep.subr.bf16.mxu0 %v1164
        %1651 = vmatpush1.bf16.msra.mxu0 %v1163
        %1652 = vmatprep.subr.bf16.mxu0 %v1168
        %1653 = vmatpush1.bf16.msra.mxu0 %v1167
        %1654 = vmatprep.subr.bf16.mxu0 %v1172
        %1655 = vmatpush1.bf16.msra.mxu0 %v1171
        %1656 = vmatprep.subr.bf16.mxu0 %v1176
        %1657 = vmatpush1.bf16.msra.mxu0 %v1175
        %1658 = vmatprep.mubr.bf16.mxu0 %v253
        %1659 = vmatmul.mubr.bf16.gmra.mrb[0].mxu0 %v252
        %v1660 = vpop.f32.mrb[0].mxu0
        %v1661 = vadd.f32 %v528, %v1660
        %v1662 = vpop.f32.mrb[0].mxu0
        %v1663 = vadd.f32 %v532, %v1662
        %v1664 = vpop.f32.mrb[0].mxu0
        %v1665 = vadd.f32 %v528, %v1664
        %v1666 = vpop.f32.mrb[0].mxu0
        %v1667 = vadd.f32 %v532, %v1666
        %1668 = vdwg.mxu0
        %1669 = vmatprep.subr.bf16.mxu0 %v1180
        %1670 = vmatpush1.bf16.msra.mxu0 %v1179
        %1671 = vmatprep.subr.bf16.mxu0 %v1184
        %1672 = vmatpush1.bf16.msra.mxu0 %v1183
        %1673 = vmatprep.subr.bf16.mxu0 %v1188
        %1674 = vmatpush1.bf16.msra.mxu0 %v1187
        %1675 = vmatprep.subr.bf16.mxu0 %v1192
        %1676 = vmatpush1.bf16.msra.mxu0 %v1191
        %1677 = vmatprep.subr.bf16.mxu0 %v1196
        %1678 = vmatpush1.bf16.msra.mxu0 %v1195
        %1679 = vmatprep.subr.bf16.mxu0 %v1200
        %1680 = vmatpush1.bf16.msra.mxu0 %v1199
        %1681 = vmatprep.subr.bf16.mxu0 %v1204
        %1682 = vmatpush1.bf16.msra.mxu0 %v1203
        %1683 = vmatprep.subr.bf16.mxu0 %v1208
        %1684 = vmatpush1.bf16.msra.mxu0 %v1207
        %1685 = vmatprep.subr.bf16.mxu0 %v1212
        %1686 = vmatpush1.bf16.msra.mxu0 %v1211
        %1687 = vmatprep.subr.bf16.mxu0 %v1216
        %1688 = vmatpush1.bf16.msra.mxu0 %v1215
        %1689 = vmatprep.subr.bf16.mxu0 %v1220
        %1690 = vmatpush1.bf16.msra.mxu0 %v1219
        %1691 = vmatprep.subr.bf16.mxu0 %v1224
        %1692 = vmatpush1.bf16.msra.mxu0 %v1223
        %1693 = vmatprep.subr.bf16.mxu0 %v1228
        %1694 = vmatpush1.bf16.msra.mxu0 %v1227
        %1695 = vmatprep.subr.bf16.mxu0 %v1232
        %1696 = vmatpush1.bf16.msra.mxu0 %v1231
        %1697 = vmatprep.subr.bf16.mxu0 %v1236
        %1698 = vmatpush1.bf16.msra.mxu0 %v1235
        %1699 = vmatprep.subr.bf16.mxu0 %v1240
        %1700 = vmatpush1.bf16.msra.mxu0 %v1239
        %1701 = vmatprep.mubr.bf16.mxu0 %v255
        %1702 = vmatmul.mubr.bf16.gmra.mrb[0].mxu0 %v254
        %v1703 = vpop.f32.mrb[0].mxu0
        %v1704 = vadd.f32 %v1661, %v1703
        %v1705 = vpop.f32.mrb[0].mxu0
        %v1706 = vadd.f32 %v1663, %v1705
        %v1707 = vpop.f32.mrb[0].mxu0
        %v1708 = vadd.f32 %v1665, %v1707
        %v1709 = vpop.f32.mrb[0].mxu0
        %v1710 = vadd.f32 %v1667, %v1709
        %1711 = vdwg.mxu0
        %1712 = vmatprep.subr.bf16.mxu0 %v1244
        %1713 = vmatpush1.bf16.msra.mxu0 %v1243
        %1714 = vmatprep.subr.bf16.mxu0 %v1248
        %1715 = vmatpush1.bf16.msra.mxu0 %v1247
        %1716 = vmatprep.subr.bf16.mxu0 %v1252
        %1717 = vmatpush1.bf16.msra.mxu0 %v1251
        %1718 = vmatprep.subr.bf16.mxu0 %v1256
        %1719 = vmatpush1.bf16.msra.mxu0 %v1255
        %1720 = vmatprep.subr.bf16.mxu0 %v1260
        %1721 = vmatpush1.bf16.msra.mxu0 %v1259
        %1722 = vmatprep.subr.bf16.mxu0 %v1264
        %1723 = vmatpush1.bf16.msra.mxu0 %v1263
        %1724 = vmatprep.subr.bf16.mxu0 %v1268
        %1725 = vmatpush1.bf16.msra.mxu0 %v1267
        %1726 = vmatprep.subr.bf16.mxu0 %v1272
        %1727 = vmatpush1.bf16.msra.mxu0 %v1271
        %1728 = vmatprep.subr.bf16.mxu0 %v1276
        %1729 = vmatpush1.bf16.msra.mxu0 %v1275
        %1730 = vmatprep.subr.bf16.mxu0 %v1280
        %1731 = vmatpush1.bf16.msra.mxu0 %v1279
        %1732 = vmatprep.subr.bf16.mxu0 %v1284
        %1733 = vmatpush1.bf16.msra.mxu0 %v1283
        %1734 = vmatprep.subr.bf16.mxu0 %v1288
        %1735 = vmatpush1.bf16.msra.mxu0 %v1287
        %1736 = vmatprep.subr.bf16.mxu0 %v1292
        %1737 = vmatpush1.bf16.msra.mxu0 %v1291
        %1738 = vmatprep.subr.bf16.mxu0 %v1296
        %1739 = vmatpush1.bf16.msra.mxu0 %v1295
        %1740 = vmatprep.subr.bf16.mxu0 %v1300
        %1741 = vmatpush1.bf16.msra.mxu0 %v1299
        %1742 = vmatprep.subr.bf16.mxu0 %v1304
        %1743 = vmatpush1.bf16.msra.mxu0 %v1303
        %1744 = vmatprep.mubr.bf16.mxu0 %v257
        %1745 = vmatmul.mubr.bf16.gmra.mrb[0].mxu0 %v256
        %v1746 = vpop.f32.mrb[0].mxu0
        %v1747 = vadd.f32 %v1704, %v1746
        %v1748 = vpop.f32.mrb[0].mxu0
        %v1749 = vadd.f32 %v1706, %v1748
        %v1750 = vpop.f32.mrb[0].mxu0
        %v1751 = vadd.f32 %v1708, %v1750
        %v1752 = vpop.f32.mrb[0].mxu0
        %v1753 = vadd.f32 %v1710, %v1752
        %1754 = vdwg.mxu0
        %v1755 = vmax.f32 %v1618, 0.0
        %v1756 = vmax.f32 %v1620, 0.0
        %v1757 = vmax.f32 %v1747, 0.0
        %v1758 = vmax.f32 %v1749, 0.0
        %v1759 = vmax.f32 %v1622, 0.0
        %v1760 = vmax.f32 %v1624, 0.0
        %v1761 = vmax.f32 %v1751, 0.0
        %v1762 = vmax.f32 %v1753, 0.0
        %v1763 = vpack.c.bf16 %v1759, %v1755
        %v1764 = vpack.c.bf16 %v1760, %v1756
        %v1765 = vpack.c.bf16 %v1761, %v1757
        %v1766 = vpack.c.bf16 %v1762, %v1758
        %v1768 = vlaneseq
        %v1769 = vshrl.u32 %v1768, 7
        %v1770 = vsub.s32 0, %v1769
        %v1771 = vrot.slane %v515, %v1770
        %v1772 = vlaneseq
        %v1773 = vshrl.u32 %v1772, 7
        %v1774 = vsub.s32 1, %v1773
        %v1775 = vrot.slane %v515, %v1774
        %v1842 = vunpack.c.l.b16 %v451
        %v1843 = vunpack.c.h.b16 %v451
        %v1844 = vunpack.c.l.b16 %v452
        %v1845 = vunpack.c.h.b16 %v452
        %v1846 = vunpack.c.l.b16 %v453
        %v1847 = vunpack.c.h.b16 %v453
        %v1848 = vunpack.c.l.b16 %v454
        %v1849 = vunpack.c.h.b16 %v454
        %v1850 = vunpack.c.l.b16 %v455
        %v1851 = vunpack.c.h.b16 %v455
        %v1852 = vunpack.c.l.b16 %v456
        %v1853 = vunpack.c.h.b16 %v456
        %v1854 = vunpack.c.l.b16 %v457
        %v1855 = vunpack.c.h.b16 %v457
        %v1856 = vunpack.c.l.b16 %v458
        %v1857 = vunpack.c.h.b16 %v458
        %v1858 = vunpack.c.l.b16 %v459
        %v1859 = vunpack.c.h.b16 %v459
        %v1860 = vunpack.c.l.b16 %v460
        %v1861 = vunpack.c.h.b16 %v460
        %v1862 = vunpack.c.l.b16 %v461
        %v1863 = vunpack.c.h.b16 %v461
        %v1864 = vunpack.c.l.b16 %v462
        %v1865 = vunpack.c.h.b16 %v462
        %v1866 = vunpack.c.l.b16 %v463
        %v1867 = vunpack.c.h.b16 %v463
        %v1868 = vunpack.c.l.b16 %v464
        %v1869 = vunpack.c.h.b16 %v464
        %v1870 = vunpack.c.l.b16 %v465
        %v1871 = vunpack.c.h.b16 %v465
        %v1872 = vunpack.c.l.b16 %v466
        %v1873 = vunpack.c.h.b16 %v466
        %v1874 = vunpack.c.l.b16 %v467
        %v1875 = vunpack.c.h.b16 %v467
        %v1876 = vunpack.c.l.b16 %v468
        %v1877 = vunpack.c.h.b16 %v468
        %v1878 = vunpack.c.l.b16 %v469
        %v1879 = vunpack.c.h.b16 %v469
        %v1880 = vunpack.c.l.b16 %v470
        %v1881 = vunpack.c.h.b16 %v470
        %v1882 = vunpack.c.l.b16 %v471
        %v1883 = vunpack.c.h.b16 %v471
        %v1884 = vunpack.c.l.b16 %v472
        %v1885 = vunpack.c.h.b16 %v472
        %v1886 = vunpack.c.l.b16 %v473
        %v1887 = vunpack.c.h.b16 %v473
        %v1888 = vunpack.c.l.b16 %v474
        %v1889 = vunpack.c.h.b16 %v474
        %v1890 = vunpack.c.l.b16 %v475
        %v1891 = vunpack.c.h.b16 %v475
        %v1892 = vunpack.c.l.b16 %v476
        %v1893 = vunpack.c.h.b16 %v476
        %v1894 = vunpack.c.l.b16 %v477
        %v1895 = vunpack.c.h.b16 %v477
        %v1896 = vunpack.c.l.b16 %v478
        %v1897 = vunpack.c.h.b16 %v478
        %v1898 = vunpack.c.l.b16 %v479
        %v1899 = vunpack.c.h.b16 %v479
        %v1900 = vunpack.c.l.b16 %v480
        %v1901 = vunpack.c.h.b16 %v480
        %v1902 = vunpack.c.l.b16 %v481
        %v1903 = vunpack.c.h.b16 %v481
        %v1904 = vunpack.c.l.b16 %v482
        %v1905 = vunpack.c.h.b16 %v482
        %v1906 = vunpack.c.l.b16 %v483
        %v1907 = vunpack.c.h.b16 %v483
        %v1908 = vunpack.c.l.b16 %v484
        %v1909 = vunpack.c.h.b16 %v484
        %v1910 = vunpack.c.l.b16 %v485
        %v1911 = vunpack.c.h.b16 %v485
        %v1912 = vunpack.c.l.b16 %v486
        %v1913 = vunpack.c.h.b16 %v486
        %v1914 = vunpack.c.l.b16 %v487
        %v1915 = vunpack.c.h.b16 %v487
        %v1916 = vunpack.c.l.b16 %v488
        %v1917 = vunpack.c.h.b16 %v488
        %v1918 = vunpack.c.l.b16 %v489
        %v1919 = vunpack.c.h.b16 %v489
        %v1920 = vunpack.c.l.b16 %v490
        %v1921 = vunpack.c.h.b16 %v490
        %v1922 = vunpack.c.l.b16 %v491
        %v1923 = vunpack.c.h.b16 %v491
        %v1924 = vunpack.c.l.b16 %v492
        %v1925 = vunpack.c.h.b16 %v492
        %v1926 = vunpack.c.l.b16 %v493
        %v1927 = vunpack.c.h.b16 %v493
        %v1928 = vunpack.c.l.b16 %v494
        %v1929 = vunpack.c.h.b16 %v494
        %v1930 = vunpack.c.l.b16 %v495
        %v1931 = vunpack.c.h.b16 %v495
        %v1932 = vunpack.c.l.b16 %v496
        %v1933 = vunpack.c.h.b16 %v496
        %v1934 = vunpack.c.l.b16 %v497
        %v1935 = vunpack.c.h.b16 %v497
        %v1936 = vunpack.c.l.b16 %v498
        %v1937 = vunpack.c.h.b16 %v498
        %v1938 = vunpack.c.l.b16 %v499
        %v1939 = vunpack.c.h.b16 %v499
        %v1940 = vunpack.c.l.b16 %v500
        %v1941 = vunpack.c.h.b16 %v500
        %v1942 = vunpack.c.l.b16 %v501
        %v1943 = vunpack.c.h.b16 %v501
        %v1944 = vunpack.c.l.b16 %v502
        %v1945 = vunpack.c.h.b16 %v502
        %v1946 = vunpack.c.l.b16 %v503
        %v1947 = vunpack.c.h.b16 %v503
        %v1948 = vunpack.c.l.b16 %v504
        %v1949 = vunpack.c.h.b16 %v504
        %v1950 = vunpack.c.l.b16 %v505
        %v1951 = vunpack.c.h.b16 %v505
        %v1952 = vunpack.c.l.b16 %v506
        %v1953 = vunpack.c.h.b16 %v506
        %v1954 = vunpack.c.l.b16 %v507
        %v1955 = vunpack.c.h.b16 %v507
        %v1956 = vunpack.c.l.b16 %v508
        %v1957 = vunpack.c.h.b16 %v508
        %v1958 = vunpack.c.l.b16 %v509
        %v1959 = vunpack.c.h.b16 %v509
        %v1960 = vunpack.c.l.b16 %v510
        %v1961 = vunpack.c.h.b16 %v510
        %v1962 = vunpack.c.l.b16 %v511
        %v1963 = vunpack.c.h.b16 %v511
        %v1964 = vunpack.c.l.b16 %v512
        %v1965 = vunpack.c.h.b16 %v512
        %v1966 = vunpack.c.l.b16 %v513
        %v1967 = vunpack.c.h.b16 %v513
        %v1968 = vunpack.c.l.b16 %v514
        %v1969 = vunpack.c.h.b16 %v514
        %v1970 = vpack.c.b16 %v1844, %v1842
        %v1971 = vpack.c.b16 %v1845, %v1843
        %v1972 = vpack.c.b16 %v1848, %v1846
        %v1973 = vpack.c.b16 %v1849, %v1847
        %v1974 = vpack.c.b16 %v1852, %v1850
        %v1975 = vpack.c.b16 %v1853, %v1851
        %v1976 = vpack.c.b16 %v1856, %v1854
        %v1977 = vpack.c.b16 %v1857, %v1855
        %v1978 = vpack.c.b16 %v1860, %v1858
        %v1979 = vpack.c.b16 %v1861, %v1859
        %v1980 = vpack.c.b16 %v1864, %v1862
        %v1981 = vpack.c.b16 %v1865, %v1863
        %v1982 = vpack.c.b16 %v1868, %v1866
        %v1983 = vpack.c.b16 %v1869, %v1867
        %v1984 = vpack.c.b16 %v1872, %v1870
        %v1985 = vpack.c.b16 %v1873, %v1871
        %v1986 = vpack.c.b16 %v1876, %v1874
        %v1987 = vpack.c.b16 %v1877, %v1875
        %v1988 = vpack.c.b16 %v1880, %v1878
        %v1989 = vpack.c.b16 %v1881, %v1879
        %v1990 = vpack.c.b16 %v1884, %v1882
        %v1991 = vpack.c.b16 %v1885, %v1883
        %v1992 = vpack.c.b16 %v1888, %v1886
        %v1993 = vpack.c.b16 %v1889, %v1887
        %v1994 = vpack.c.b16 %v1892, %v1890
        %v1995 = vpack.c.b16 %v1893, %v1891
        %v1996 = vpack.c.b16 %v1896, %v1894
        %v1997 = vpack.c.b16 %v1897, %v1895
        %v1998 = vpack.c.b16 %v1900, %v1898
        %v1999 = vpack.c.b16 %v1901, %v1899
        %v2000 = vpack.c.b16 %v1904, %v1902
        %v2001 = vpack.c.b16 %v1905, %v1903
        %v2002 = vpack.c.b16 %v1908, %v1906
        %v2003 = vpack.c.b16 %v1909, %v1907
        %v2004 = vpack.c.b16 %v1912, %v1910
        %v2005 = vpack.c.b16 %v1913, %v1911
        %v2006 = vpack.c.b16 %v1916, %v1914
        %v2007 = vpack.c.b16 %v1917, %v1915
        %v2008 = vpack.c.b16 %v1920, %v1918
        %v2009 = vpack.c.b16 %v1921, %v1919
        %v2010 = vpack.c.b16 %v1924, %v1922
        %v2011 = vpack.c.b16 %v1925, %v1923
        %v2012 = vpack.c.b16 %v1928, %v1926
        %v2013 = vpack.c.b16 %v1929, %v1927
        %v2014 = vpack.c.b16 %v1932, %v1930
        %v2015 = vpack.c.b16 %v1933, %v1931
        %v2016 = vpack.c.b16 %v1936, %v1934
        %v2017 = vpack.c.b16 %v1937, %v1935
        %v2018 = vpack.c.b16 %v1940, %v1938
        %v2019 = vpack.c.b16 %v1941, %v1939
        %v2020 = vpack.c.b16 %v1944, %v1942
        %v2021 = vpack.c.b16 %v1945, %v1943
        %v2022 = vpack.c.b16 %v1948, %v1946
        %v2023 = vpack.c.b16 %v1949, %v1947
        %v2024 = vpack.c.b16 %v1952, %v1950
        %v2025 = vpack.c.b16 %v1953, %v1951
        %v2026 = vpack.c.b16 %v1956, %v1954
        %v2027 = vpack.c.b16 %v1957, %v1955
        %v2028 = vpack.c.b16 %v1960, %v1958
        %v2029 = vpack.c.b16 %v1961, %v1959
        %v2030 = vpack.c.b16 %v1964, %v1962
        %v2031 = vpack.c.b16 %v1965, %v1963
        %v2032 = vpack.c.b16 %v1968, %v1966
        %v2033 = vpack.c.b16 %v1969, %v1967
        %2098 = vmatprep.subr.bf16.mxu0 %v1971
        %2099 = vmatpush1.bf16.msra.mxu0 %v1970
        %2100 = vmatprep.subr.bf16.mxu0 %v1973
        %2101 = vmatpush1.bf16.msra.mxu0 %v1972
        %2102 = vmatprep.subr.bf16.mxu0 %v1975
        %2103 = vmatpush1.bf16.msra.mxu0 %v1974
        %2104 = vmatprep.subr.bf16.mxu0 %v1977
        %2105 = vmatpush1.bf16.msra.mxu0 %v1976
        %2106 = vmatprep.subr.bf16.mxu0 %v1979
        %2107 = vmatpush1.bf16.msra.mxu0 %v1978
        %2108 = vmatprep.subr.bf16.mxu0 %v1981
        %2109 = vmatpush1.bf16.msra.mxu0 %v1980
        %2110 = vmatprep.subr.bf16.mxu0 %v1983
        %2111 = vmatpush1.bf16.msra.mxu0 %v1982
        %2112 = vmatprep.subr.bf16.mxu0 %v1985
        %2113 = vmatpush1.bf16.msra.mxu0 %v1984
        %2114 = vmatprep.subr.bf16.mxu0 %v1987
        %2115 = vmatpush1.bf16.msra.mxu0 %v1986
        %2116 = vmatprep.subr.bf16.mxu0 %v1989
        %2117 = vmatpush1.bf16.msra.mxu0 %v1988
        %2118 = vmatprep.subr.bf16.mxu0 %v1991
        %2119 = vmatpush1.bf16.msra.mxu0 %v1990
        %2120 = vmatprep.subr.bf16.mxu0 %v1993
        %2121 = vmatpush1.bf16.msra.mxu0 %v1992
        %2122 = vmatprep.subr.bf16.mxu0 %v1995
        %2123 = vmatpush1.bf16.msra.mxu0 %v1994
        %2124 = vmatprep.subr.bf16.mxu0 %v1997
        %2125 = vmatpush1.bf16.msra.mxu0 %v1996
        %2126 = vmatprep.subr.bf16.mxu0 %v1999
        %2127 = vmatpush1.bf16.msra.mxu0 %v1998
        %2128 = vmatprep.subr.bf16.mxu0 %v2001
        %2129 = vmatpush1.bf16.msra.mxu0 %v2000
        %2130 = vmatprep.mubr.bf16.mxu0 %v1764
        %2131 = vmatmul.mubr.bf16.gmra.mrb[0].mxu0 %v1763
        %v2132 = vpop.f32.mrb[0].mxu0
        %v2133 = vadd.f32 %v1771, %v2132
        %v2134 = vpop.f32.mrb[0].mxu0
        %v2135 = vadd.f32 %v1775, %v2134
        %v2136 = vpop.f32.mrb[0].mxu0
        %v2137 = vadd.f32 %v1771, %v2136
        %v2138 = vpop.f32.mrb[0].mxu0
        %v2139 = vadd.f32 %v1775, %v2138
        %2140 = vdwg.mxu0
        %2141 = vmatprep.subr.bf16.mxu0 %v2003
        %2142 = vmatpush1.bf16.msra.mxu0 %v2002
        %2143 = vmatprep.subr.bf16.mxu0 %v2005
        %2144 = vmatpush1.bf16.msra.mxu0 %v2004
        %2145 = vmatprep.subr.bf16.mxu0 %v2007
        %2146 = vmatpush1.bf16.msra.mxu0 %v2006
        %2147 = vmatprep.subr.bf16.mxu0 %v2009
        %2148 = vmatpush1.bf16.msra.mxu0 %v2008
        %2149 = vmatprep.subr.bf16.mxu0 %v2011
        %2150 = vmatpush1.bf16.msra.mxu0 %v2010
        %2151 = vmatprep.subr.bf16.mxu0 %v2013
        %2152 = vmatpush1.bf16.msra.mxu0 %v2012
        %2153 = vmatprep.subr.bf16.mxu0 %v2015
        %2154 = vmatpush1.bf16.msra.mxu0 %v2014
        %2155 = vmatprep.subr.bf16.mxu0 %v2017
        %2156 = vmatpush1.bf16.msra.mxu0 %v2016
        %2157 = vmatprep.subr.bf16.mxu0 %v2019
        %2158 = vmatpush1.bf16.msra.mxu0 %v2018
        %2159 = vmatprep.subr.bf16.mxu0 %v2021
        %2160 = vmatpush1.bf16.msra.mxu0 %v2020
        %2161 = vmatprep.subr.bf16.mxu0 %v2023
        %2162 = vmatpush1.bf16.msra.mxu0 %v2022
        %2163 = vmatprep.subr.bf16.mxu0 %v2025
        %2164 = vmatpush1.bf16.msra.mxu0 %v2024
        %2165 = vmatprep.subr.bf16.mxu0 %v2027
        %2166 = vmatpush1.bf16.msra.mxu0 %v2026
        %2167 = vmatprep.subr.bf16.mxu0 %v2029
        %2168 = vmatpush1.bf16.msra.mxu0 %v2028
        %2169 = vmatprep.subr.bf16.mxu0 %v2031
        %2170 = vmatpush1.bf16.msra.mxu0 %v2030
        %2171 = vmatprep.subr.bf16.mxu0 %v2033
        %2172 = vmatpush1.bf16.msra.mxu0 %v2032
        %2173 = vmatprep.mubr.bf16.mxu0 %v1766
        %2174 = vmatmul.mubr.bf16.gmra.mrb[0].mxu0 %v1765
        %v2175 = vpop.f32.mrb[0].mxu0
        %v2176 = vadd.f32 %v2133, %v2175
        %v2177 = vpop.f32.mrb[0].mxu0
        %v2178 = vadd.f32 %v2135, %v2177
        %v2179 = vpop.f32.mrb[0].mxu0
        %v2180 = vadd.f32 %v2137, %v2179
        %v2181 = vpop.f32.mrb[0].mxu0
        %v2182 = vadd.f32 %v2139, %v2181
        %2183 = vdwg.mxu0
        %v2184 = vmax.f32 %v2176, 0.0
        %v2185 = vmax.f32 %v2178, 0.0
        %v2186 = vmax.f32 %v2180, 0.0
        %v2187 = vmax.f32 %v2182, 0.0
        %2188 = vst [vmem:[%s239] sm:$0xff] %v2184
        %2189 = vst [vmem:[%s239 + $0x8] sm:$0xff] %v2185
        %2190 = vst [vmem:[%s239 + $0x10] sm:$0xff] %v2186
        %2191 = vst [vmem:[%s239 + $0x18] sm:$0xff] %v2187
        %p2192 = scmp.lt.s32.totalorder %s17, 1
        %s2193 = scalar_select %p2192, %s17, 1
        %s2194 = smul.addr %s2193, 4
        %s2195 = smul.addr %s2194, 8
        %s2196 = scalar_lea.vmem %s5, %s2195
        // Predicated region
        $region45: #{model_forward.1} parent=39 // pred_check
          %p2197 = pneg %p145
        $region46: #{model_forward.1} parent=39 // pred_check_branch
          %2199 = sbr.rel (%p2197) target = $region48
        $region47: #{model_forward.1} parent=39 // pred_region
          _
        $region48: #{model_forward.1} parent=39 // pred_fallthru
          _
      $region40: #{model_forward.1} parent=5 // pred_fallthru
        _
      %p2200 = scmp.le.s32.totalorder 2, %s12
      // Predicated region
      $region49: #{model_forward.1} parent=5 // pred_check
        %p2201 = pneg %p2200
      $region50: #{model_forward.1} parent=5 // pred_check_branch
        %2203 = sbr.rel (%p2201) target = $region52
      $region51: #{model_forward.1} parent=5 // pred_region
        %s2204 = ssub.s32 %s12, 2
        // Predicated region
        $region53: #{model_forward.1} parent=51 // pred_check
          %p2205 = pneg %p151
        $region54: #{model_forward.1} parent=51 // pred_check_branch
          %2207 = sbr.rel (%p2205) target = $region56
        $region55: #{model_forward.1} parent=51 // pred_region
          %p2208 = scmp.lt.s32.totalorder %s18, 1
          %s2209 = scalar_select %p2208, %s18, 1
          %s2210 = smul.addr %s2209, 4
          %s2211 = smul.addr %s2210, 8
          %s2212 = scalar_lea.vmem %s5, %s2211
        $region56: #{model_forward.1} parent=51 // pred_fallthru
          _
      $region52: #{model_forward.1} parent=5 // pred_fallthru
        _
    $region6: #{model_forward.1} parent=1 // loop_footer
      %s16 = sadd.s32 1, %s12
    $region7: #{model_forward.1} parent=1 // loop_footer_branch
      %11 = sbr.rel target = $region3
    $region8: #{model_forward.1} parent=1 // loop_exit
      _
    %2213 = vsyncpa [#allocation3], 1
    %s2214 = scalar_lea.sflag [#allocation3], 1
    %2215 = vsyncpa %s2214, 1

</llo_original>
